<compile_context>
chip_gen: v6e
topology: v6e:2x2x1
jax: 0.10.0
libtpu: 0.0.40
codegen_flags: <defaults>
</compile_context>

<pallas_src>
import functools

import numpy as np

import jax
import jax.numpy as jnp
from jax.experimental import pallas as pl
from jax.experimental.pallas import tpu as pltpu


# --------------------------- weight construction ---------------------------- #

def _bilinear_weights_np(in_size: int, out_size: int) -> np.ndarray:
    """(out, in) interpolation matrix: align_corners=False, half-pixel, edge-clamped."""
    scale = in_size / out_size
    dst = np.arange(out_size, dtype=np.float64)
    src = np.clip((dst + 0.5) * scale - 0.5, 0.0, in_size - 1)
    i0 = np.floor(src).astype(np.int64)
    i1 = np.minimum(i0 + 1, in_size - 1)
    frac = (src - i0).astype(np.float32)
    w = np.zeros((out_size, in_size), np.float32)
    rows = np.arange(out_size)
    np.add.at(w, (rows, i0), 1.0 - frac)
    np.add.at(w, (rows, i1), frac)
    return w


@functools.lru_cache(maxsize=None)
def _resize_weights(h: int, w: int, size: int, rows_pad: int):
    """Host-side f32 weights: Wy (rows_pad, h) (zero-padded rows) and Wx^T (w, size)."""
    wy = _bilinear_weights_np(h, size)                           # (size, h)
    if rows_pad > size:
        wy = np.concatenate(
            [wy, np.zeros((rows_pad - size, h), np.float32)], axis=0)
    wxt = _bilinear_weights_np(w, size).T                        # (w, size)
    return wy, wxt


# ------------------------------- tile choices -------------------------------- #

def _row_tile(size: int) -> int:
    """Output-row tile. >=256 preferred (fills the 256-wide v6e/v7x MXU; harmless on
    v5e's 128-wide MXU). All candidates are multiples of 16 (bf16 sublane packing)."""
    if size <= 256:
        return size
    for t in (512, 448, 384, 320, 256, 192, 160, 128):
        if size % t == 0:
            return t
    return 256   # non-divisible: cdiv grid, zero-padded Wy rows, masked last out tile


def _h_tile(h: int) -> int:
    """Contraction tile over input rows.  When < h it must be a multiple of 128
    (it is Wy's lane dimension)."""
    if h <= 1024:
        return h
    for t in (512, 384, 256, 128):
        if h % t == 0:
            return t
    return h   # TODO(synk): pad H for very large inputs not divisible by 128.


def _vmem_limit_bytes(c, h, w, size, tm, th, img_itemsize, compute_itemsize,
                      out_itemsize) -> int:
    img_blk = c * th * w * img_itemsize * 2          # double-buffered input tile
    wy_blk = tm * th * compute_itemsize * 2
    wxt_blk = w * size * compute_itemsize * 2        # worst case (double-buffered)
    out_blk = c * tm * size * out_itemsize * 2
    acc = c * tm * w * 4                             # f32 accumulator scratch
    total = img_blk + wy_blk + wxt_blk + out_blk + acc
    return int(min(max(2 * total + (2 << 20), 32 << 20), 64 << 20))


# ------------------------------ kernel bodies ------------------------------- #

def _make_resize_kernel(c: int, compute_dtype):
    def kernel(img_ref, wy_ref, wxt_ref, out_ref, acc_ref):
        # img_ref: (C, th, W)   wy_ref: (tm, th)   wxt_ref: (W, S)
        # out_ref: (C, tm, S)   acc_ref: (C, tm, W) f32 accumulator
        hi = pl.program_id(1)
        nh = pl.num_programs(1)

        @pl.when(hi == 0)
        def _():
            acc_ref[...] = jnp.zeros_like(acc_ref)

        wy = wy_ref[...]                                   # compute_dtype
        img = img_ref[...].astype(compute_dtype)           # cast per tile (bf16 MXU path)
        for ci in range(c):                                # static unroll over channels
            acc_ref[ci] = acc_ref[ci] + jnp.dot(
                wy, img[ci], preferred_element_type=jnp.float32)

        @pl.when(hi == nh - 1)
        def _():
            wxt = wxt_ref[...]                             # compute_dtype
            for ci in range(c):
                out_ref[ci] = jnp.dot(
                    acc_ref[ci].astype(compute_dtype), wxt,
                    preferred_element_type=jnp.float32).astype(out_ref.dtype)
    return kernel


def _make_target_kernel(inv_h: float, inv_w: float):
    # Kept f32 throughout (tiny elementwise op; v5e VPU has no bf16).
    def kernel(boxes_t_ref, labels_t_ref, out_ref):
        bt = boxes_t_ref[...]                 # (4, N): rows = x0, y0, x1, y1
        lab = labels_t_ref[...]               # (1, N)
        x0, y0, x1, y1 = bt[0:1, :], bt[1:2, :], bt[2:3, :], bt[3:4, :]
        out_ref[...] = jnp.concatenate([
            jnp.zeros_like(lab),              # img_idx = zeros_like(labels)
            lab,                              # labels
            (x0 + x1) * (0.5 * inv_h),        # x / image.shape[1]
            (y0 + y1) * (0.5 * inv_w),        # y / image.shape[2]
            (x1 - x0) * inv_h,                # w / image.shape[1]
            (y1 - y0) * inv_w,                # h / image.shape[2]
        ], axis=0)                            # (6, N)
    return kernel


# ------------------------------ pallas wrappers ------------------------------ #

def _resize_call(image, wy, wxt, *, size, tm, th, grid_rows, compute_dtype,
                 single_buffer_consts):
    c, h, w = image.shape
    h_tiles = h // th

    wxt_kwargs = {}
    if single_buffer_consts:
        # Constant-index operand: a single VMEM copy (no double-buffering).
        wxt_kwargs["pipeline_mode"] = pl.Buffered(1)

    in_specs = [
        pl.BlockSpec((c, th, w), lambda i, hi: (0, hi, 0)),            # CHW image tile
        pl.BlockSpec((tm, th), lambda i, hi: (i, hi)),                 # Wy tile
        pl.BlockSpec((w, size), lambda i, hi: (0, 0), **wxt_kwargs),   # shared Wx^T
    ]
    out_spec = pl.BlockSpec((c, tm, size), lambda i, hi: (0, i, 0))

    vmem_limit = _vmem_limit_bytes(
        c, h, w, size, tm, th,
        jnp.dtype(image.dtype).itemsize,
        jnp.dtype(compute_dtype).itemsize,
        jnp.dtype(image.dtype).itemsize)

    return pl.pallas_call(
        _make_resize_kernel(c, compute_dtype),
        out_shape=jax.ShapeDtypeStruct((c, size, size), image.dtype),
        grid_spec=pltpu.PrefetchScalarGridSpec(
            num_scalar_prefetch=0,
            grid=(grid_rows, h_tiles),                 # reduction (H) axis last
            in_specs=in_specs,
            out_specs=out_spec,
            scratch_shapes=[pltpu.VMEM((c, tm, w), jnp.float32)],
        ),
        compiler_params=pltpu.CompilerParams(
            dimension_semantics=("parallel", "arbitrary"),
            vmem_limit_bytes=vmem_limit,
        ),
    )(image, wy, wxt)


def resize_and_convert_to_yolo(image, size, target=None, *,
                               compute_dtype=jnp.bfloat16):
    """Mirrors ResizeAndConvertToYOLO.forward.

    image:  (C, H, W) float
    target: optional dict with 'boxes' (N, 4) xyxy and 'labels' (N,)
    compute_dtype: MXU operand dtype for the resize (bf16 fast path, f32 bit-exact).
    """
    assert image.ndim == 3, "expected a single CHW image"
    c, h, w = image.shape

    tm = _row_tile(size)
    grid_rows = pl.cdiv(size, tm)
    rows_pad = grid_rows * tm
    th = _h_tile(h)

    wy_np, wxt_np = _resize_weights(h, w, size, rows_pad)
    wy = jnp.asarray(wy_np, dtype=compute_dtype)
    wxt = jnp.asarray(wxt_np, dtype=compute_dtype)

    try:
        resized = _resize_call(image, wy, wxt, size=size, tm=tm, th=th,
                               grid_rows=grid_rows, compute_dtype=compute_dtype,
                               single_buffer_consts=True)
    except Exception:
        # Older JAX: pipeline_mode=pl.Buffered(1) not supported -> default buffering.
        resized = _resize_call(image, wy, wxt, size=size, tm=tm, th=th,
                               grid_rows=grid_rows, compute_dtype=compute_dtype,
                               single_buffer_consts=False)

    if target is None:
        return resized, None

    boxes = target["boxes"]
    labels = target["labels"]
    n = boxes.shape[0]
    boxes_t = jnp.transpose(boxes, (1, 0)).astype(jnp.float32)     # (4, N), N on lanes
    labels_t = labels.reshape(1, n).astype(jnp.float32)            # (1, N)
    inv_h = 1.0 / float(h)   # image.shape[1]  (matches the PyTorch module exactly)
    inv_w = 1.0 / float(w)   # image.shape[2]

    # Separate tiny call: keeps the resize row grid fully "parallel" (megacore on v7x).
    tgt_t = pl.pallas_call(
        _make_target_kernel(inv_h, inv_w),
        out_shape=jax.ShapeDtypeStruct((6, n), jnp.float32),
        grid=(1,),
        in_specs=[pl.BlockSpec((4, n), lambda i: (0, 0)),
                  pl.BlockSpec((1, n), lambda i: (0, 0))],
        out_specs=pl.BlockSpec((6, n), lambda i: (0, 0)),
    )(boxes_t, labels_t)

    return resized, jnp.transpose(tgt_t, (1, 0))                   # (N, 6)


# ---------------------------------- main ------------------------------------ #

if __name__ == "__main__":
    key = jax.random.PRNGKey(0)
    k1, k2, k3 = jax.random.split(key, 3)

    C, H, W = 3, 16, 16
    SIZE = 32                      # upsample 16 -> 32 (antialias irrelevant)
    N_BOX = 8

    image = jax.random.uniform(k1, (C, H, W), jnp.float32)
    xy0 = jax.random.uniform(k2, (N_BOX, 2), jnp.float32, 0.0, 8.0)
    wh = jax.random.uniform(k3, (N_BOX, 2), jnp.float32, 1.0, 7.0)
    boxes = jnp.concatenate([xy0, xy0 + wh], axis=1)               # xyxy
    labels = (jnp.arange(N_BOX) % 4).astype(jnp.float32)
    target = {"boxes": boxes, "labels": labels}

    # Default fast path: bf16 MXU operands, f32 accumulation.
    resized, targets = resize_and_convert_to_yolo(image, SIZE, target)
    # Bit-exact path: f32 operands (matches torchvision numerics).
    resized_f32, targets_f32 = resize_and_convert_to_yolo(
        image, SIZE, target, compute_dtype=jnp.float32)
    resized_only, none_target = resize_and_convert_to_yolo(image, SIZE, None)
    jax.block_until_ready((resized, targets, resized_f32, targets_f32, resized_only))

    # --- pure-JAX reference check ---
    wy_ref = jnp.asarray(_bilinear_weights_np(H, SIZE))
    wx_ref = jnp.asarray(_bilinear_weights_np(W, SIZE))
    ref_resized = jnp.einsum("oh,chw,pw->cop", wy_ref, image, wx_ref)

    x0, y0, x1, y1 = boxes[:, 0], boxes[:, 1], boxes[:, 2], boxes[:, 3]
    ref_targets = jnp.stack([
        jnp.zeros_like(labels),
        labels,
        (x0 + x1) / 2 / H,     # image.shape[1]
        (y0 + y1) / 2 / W,     # image.shape[2]
        (x1 - x0) / H,
        (y1 - y0) / W,
    ], axis=1)

    assert resized.shape == (C, SIZE, SIZE) and resized.dtype == jnp.float32
    assert resized_f32.shape == (C, SIZE, SIZE)
    assert resized_only.shape == (C, SIZE, SIZE)
    assert targets.shape == (N_BOX, 6) and targets.dtype == jnp.float32
    assert none_target is None
    assert jnp.allclose(resized_f32, ref_resized, atol=1e-5, rtol=1e-5)
    assert jnp.allclose(resized, ref_resized, atol=2e-2, rtol=2e-2)
    assert jnp.allclose(resized_only, ref_resized, atol=2e-2, rtol=2e-2)
    assert jnp.allclose(targets, ref_targets, atol=1e-6, rtol=1e-6)
    assert jnp.allclose(targets_f32, ref_targets, atol=1e-6, rtol=1e-6)

    print("KERNEL_OK")
</pallas_src>

<mosaic_0001>
module attributes {stable_mosaic.version = 11 : i64} {
  func.func @kernel(%arg0: i32, %arg1: i32, %arg2: memref<3x16x16xf32, #tpu.memory_space<vmem>>, %arg3: memref<32x16xbf16, #tpu.memory_space<vmem>>, %arg4: memref<16x32xbf16, #tpu.memory_space<vmem>>, %arg5: memref<3x32x32xf32, #tpu.memory_space<vmem>>, %arg6: memref<3x32x16xf32, #tpu.memory_space<vmem>>) attributes {dimension_semantics = [#tpu.dimension_semantics<parallel>, #tpu.dimension_semantics<arbitrary>], iteration_bounds = array<i64: 1, 1>, scalar_prefetch = 0 : i64, scratch_operands = 1 : i64, tpu.core_type = #tpu.core_type<tc>, window_params = [{transform_indices = @transform_0, window_bounds = array<i64: 3, 16, 16>}, {transform_indices = @transform_1, window_bounds = array<i64: 32, 16>}, {pipeline_mode = #tpu.pipeline_mode<synchronous>, transform_indices = @transform_2, window_bounds = array<i64: 16, 32>}, {transform_indices = @transform_3, window_bounds = array<i64: 3, 32, 32>}]} {
    %c0_i32 = arith.constant 0 : i32
    %0 = arith.cmpi eq, %arg1, %c0_i32 : i32
    %1 = arith.extui %0 : i1 to i32
    %c0_i32_0 = arith.constant 0 : i32
    %2 = arith.cmpi ne, %1, %c0_i32_0 : i32
    scf.if %2 {
      %cst_25 = arith.constant 0.000000e+00 : f32
      %36 = vector.broadcast %cst_25 : f32 to vector<3x32x16xf32>
      %c0_26 = arith.constant 0 : index
      %c0_27 = arith.constant 0 : index
      %c0_28 = arith.constant 0 : index
      %37 = vector.load %arg6[%c0_26, %c0_27, %c0_28] : memref<3x32x16xf32, #tpu.memory_space<vmem>>, vector<3x32x16xf32>
      tpu.vector_store %arg6[%c0_26, %c0_27, %c0_28], %36 {strides = array<i32>} : memref<3x32x16xf32, #tpu.memory_space<vmem>>, vector<3x32x16xf32>,
    } else {
    }
    %c0 = arith.constant 0 : index
    %c0_1 = arith.constant 0 : index
    %3 = vector.load %arg3[%c0, %c0_1] : memref<32x16xbf16, #tpu.memory_space<vmem>>, vector<32x16xbf16>
    %c0_2 = arith.constant 0 : index
    %c0_3 = arith.constant 0 : index
    %c0_4 = arith.constant 0 : index
    %4 = vector.load %arg2[%c0_2, %c0_3, %c0_4] : memref<3x16x16xf32, #tpu.memory_space<vmem>>, vector<3x16x16xf32>
    %5 = arith.truncf %4 : vector<3x16x16xf32> to vector<3x16x16xbf16>
    %c0_5 = arith.constant 0 : index
    %c0_6 = arith.constant 0 : index
    %c0_7 = arith.constant 0 : index
    %6 = vector.load %arg6[%c0_5, %c0_6, %c0_7] : memref<3x32x16xf32, #tpu.memory_space<vmem>>, vector<1x32x16xf32>
    %7 = vector.shape_cast %6 : vector<1x32x16xf32> to vector<32x16xf32>
    %8 = vector.extract_strided_slice %5 {offsets = [0, 0, 0], sizes = [1, 16, 16], strides = [1, 1, 1]} : vector<3x16x16xbf16> to vector<1x16x16xbf16>
    %9 = vector.shape_cast %8 : vector<1x16x16xbf16> to vector<16x16xbf16>
    %cst = arith.constant dense<0.000000e+00> : vector<32x16xf32>
    %10 = tpu.matmul %3, %9, %cst {dimension_numbers = #tpu.dot_dimension_numbers<[1], [0], [0], [1], [0, 0, 1, 1], [], []>} : vector<32x16xbf16>, vector<16x16xbf16>, vector<32x16xf32> -> vector<32x16xf32>
    %11 = arith.addf %7, %10 : vector<32x16xf32>
    %c0_8 = arith.constant 0 : index
    %c0_9 = arith.constant 0 : index
    %c0_10 = arith.constant 0 : index
    %12 = vector.load %arg6[%c0_8, %c0_9, %c0_10] : memref<3x32x16xf32, #tpu.memory_space<vmem>>, vector<1x32x16xf32>
    %13 = vector.shape_cast %12 : vector<1x32x16xf32> to vector<32x16xf32>
    %14 = vector.shape_cast %11 : vector<32x16xf32> to vector<1x32x16xf32>
    tpu.vector_store %arg6[%c0_8, %c0_9, %c0_10], %14 {strides = array<i32>} : memref<3x32x16xf32, #tpu.memory_space<vmem>>, vector<1x32x16xf32>,
    %c1 = arith.constant 1 : index
    %c0_11 = arith.constant 0 : index
    %c0_12 = arith.constant 0 : index
    %15 = vector.load %arg6[%c1, %c0_11, %c0_12] : memref<3x32x16xf32, #tpu.memory_space<vmem>>, vector<1x32x16xf32>
    %16 = vector.shape_cast %15 : vector<1x32x16xf32> to vector<32x16xf32>
    %17 = vector.extract_strided_slice %5 {offsets = [1, 0, 0], sizes = [1, 16, 16], strides = [1, 1, 1]} : vector<3x16x16xbf16> to vector<1x16x16xbf16>
    %18 = vector.shape_cast %17 : vector<1x16x16xbf16> to vector<16x16xbf16>
    %cst_13 = arith.constant dense<0.000000e+00> : vector<32x16xf32>
    %19 = tpu.matmul %3, %18, %cst_13 {dimension_numbers = #tpu.dot_dimension_numbers<[1], [0], [0], [1], [0, 0, 1, 1], [], []>} : vector<32x16xbf16>, vector<16x16xbf16>, vector<32x16xf32> -> vector<32x16xf32>
    %20 = arith.addf %16, %19 : vector<32x16xf32>
    %c1_14 = arith.constant 1 : index
    %c0_15 = arith.constant 0 : index
    %c0_16 = arith.constant 0 : index
    %21 = vector.load %arg6[%c1_14, %c0_15, %c0_16] : memref<3x32x16xf32, #tpu.memory_space<vmem>>, vector<1x32x16xf32>
    %22 = vector.shape_cast %21 : vector<1x32x16xf32> to vector<32x16xf32>
    %23 = vector.shape_cast %20 : vector<32x16xf32> to vector<1x32x16xf32>
    tpu.vector_store %arg6[%c1_14, %c0_15, %c0_16], %23 {strides = array<i32>} : memref<3x32x16xf32, #tpu.memory_space<vmem>>, vector<1x32x16xf32>,
    %c2 = arith.constant 2 : index
    %c0_17 = arith.constant 0 : index
    %c0_18 = arith.constant 0 : index
    %24 = vector.load %arg6[%c2, %c0_17, %c0_18] : memref<3x32x16xf32, #tpu.memory_space<vmem>>, vector<1x32x16xf32>
    %25 = vector.shape_cast %24 : vector<1x32x16xf32> to vector<32x16xf32>
    %26 = vector.extract_strided_slice %5 {offsets = [2, 0, 0], sizes = [1, 16, 16], strides = [1, 1, 1]} : vector<3x16x16xbf16> to vector<1x16x16xbf16>
    %27 = vector.shape_cast %26 : vector<1x16x16xbf16> to vector<16x16xbf16>
    %cst_19 = arith.constant dense<0.000000e+00> : vector<32x16xf32>
    %28 = tpu.matmul %3, %27, %cst_19 {dimension_numbers = #tpu.dot_dimension_numbers<[1], [0], [0], [1], [0, 0, 1, 1], [], []>} : vector<32x16xbf16>, vector<16x16xbf16>, vector<32x16xf32> -> vector<32x16xf32>
    %29 = arith.addf %25, %28 : vector<32x16xf32>
    %c2_20 = arith.constant 2 : index
    %c0_21 = arith.constant 0 : index
    %c0_22 = arith.constant 0 : index
    %30 = vector.load %arg6[%c2_20, %c0_21, %c0_22] : memref<3x32x16xf32, #tpu.memory_space<vmem>>, vector<1x32x16xf32>
    %31 = vector.shape_cast %30 : vector<1x32x16xf32> to vector<32x16xf32>
    %32 = vector.shape_cast %29 : vector<32x16xf32> to vector<1x32x16xf32>
    tpu.vector_store %arg6[%c2_20, %c0_21, %c0_22], %32 {strides = array<i32>} : memref<3x32x16xf32, #tpu.memory_space<vmem>>, vector<1x32x16xf32>,
    %c0_i32_23 = arith.constant 0 : i32
    %33 = arith.cmpi eq, %arg1, %c0_i32_23 : i32
    %34 = arith.extui %33 : i1 to i32
    %c0_i32_24 = arith.constant 0 : i32
    %35 = arith.cmpi ne, %34, %c0_i32_24 : i32
    scf.if %35 {
      %c0_25 = arith.constant 0 : index
      %c0_26 = arith.constant 0 : index
      %36 = vector.load %arg4[%c0_25, %c0_26] : memref<16x32xbf16, #tpu.memory_space<vmem>>, vector<16x32xbf16>
      %c0_27 = arith.constant 0 : index
      %c0_28 = arith.constant 0 : index
      %c0_29 = arith.constant 0 : index
      %37 = vector.load %arg6[%c0_27, %c0_28, %c0_29] : memref<3x32x16xf32, #tpu.memory_space<vmem>>, vector<1x32x16xf32>
      %38 = vector.shape_cast %37 : vector<1x32x16xf32> to vector<32x16xf32>
      %39 = arith.truncf %38 : vector<32x16xf32> to vector<32x16xbf16>
      %cst_30 = arith.constant dense<0.000000e+00> : vector<32x32xf32>
      %40 = tpu.matmul %39, %36, %cst_30 {dimension_numbers = #tpu.dot_dimension_numbers<[1], [0], [0], [1], [0, 0, 1, 1], [], []>} : vector<32x16xbf16>, vector<16x32xbf16>, vector<32x32xf32> -> vector<32x32xf32>
      %c0_31 = arith.constant 0 : index
      %c0_32 = arith.constant 0 : index
      %c0_33 = arith.constant 0 : index
      %41 = vector.load %arg5[%c0_31, %c0_32, %c0_33] : memref<3x32x32xf32, #tpu.memory_space<vmem>>, vector<1x32x32xf32>
      %42 = vector.shape_cast %41 : vector<1x32x32xf32> to vector<32x32xf32>
      %43 = vector.shape_cast %40 : vector<32x32xf32> to vector<1x32x32xf32>
      tpu.vector_store %arg5[%c0_31, %c0_32, %c0_33], %43 {strides = array<i32>} : memref<3x32x32xf32, #tpu.memory_space<vmem>>, vector<1x32x32xf32>,
      %c1_34 = arith.constant 1 : index
      %c0_35 = arith.constant 0 : index
      %c0_36 = arith.constant 0 : index
      %44 = vector.load %arg6[%c1_34, %c0_35, %c0_36] : memref<3x32x16xf32, #tpu.memory_space<vmem>>, vector<1x32x16xf32>
      %45 = vector.shape_cast %44 : vector<1x32x16xf32> to vector<32x16xf32>
      %46 = arith.truncf %45 : vector<32x16xf32> to vector<32x16xbf16>
      %cst_37 = arith.constant dense<0.000000e+00> : vector<32x32xf32>
      %47 = tpu.matmul %46, %36, %cst_37 {dimension_numbers = #tpu.dot_dimension_numbers<[1], [0], [0], [1], [0, 0, 1, 1], [], []>} : vector<32x16xbf16>, vector<16x32xbf16>, vector<32x32xf32> -> vector<32x32xf32>
      %c1_38 = arith.constant 1 : index
      %c0_39 = arith.constant 0 : index
      %c0_40 = arith.constant 0 : index
      %48 = vector.load %arg5[%c1_38, %c0_39, %c0_40] : memref<3x32x32xf32, #tpu.memory_space<vmem>>, vector<1x32x32xf32>
      %49 = vector.shape_cast %48 : vector<1x32x32xf32> to vector<32x32xf32>
      %50 = vector.shape_cast %47 : vector<32x32xf32> to vector<1x32x32xf32>
      tpu.vector_store %arg5[%c1_38, %c0_39, %c0_40], %50 {strides = array<i32>} : memref<3x32x32xf32, #tpu.memory_space<vmem>>, vector<1x32x32xf32>,
      %c2_41 = arith.constant 2 : index
      %c0_42 = arith.constant 0 : index
      %c0_43 = arith.constant 0 : index
      %51 = vector.load %arg6[%c2_41, %c0_42, %c0_43] : memref<3x32x16xf32, #tpu.memory_space<vmem>>, vector<1x32x16xf32>
      %52 = vector.shape_cast %51 : vector<1x32x16xf32> to vector<32x16xf32>
      %53 = arith.truncf %52 : vector<32x16xf32> to vector<32x16xbf16>
      %cst_44 = arith.constant dense<0.000000e+00> : vector<32x32xf32>
      %54 = tpu.matmul %53, %36, %cst_44 {dimension_numbers = #tpu.dot_dimension_numbers<[1], [0], [0], [1], [0, 0, 1, 1], [], []>} : vector<32x16xbf16>, vector<16x32xbf16>, vector<32x32xf32> -> vector<32x32xf32>
      %c2_45 = arith.constant 2 : index
      %c0_46 = arith.constant 0 : index
      %c0_47 = arith.constant 0 : index
      %55 = vector.load %arg5[%c2_45, %c0_46, %c0_47] : memref<3x32x32xf32, #tpu.memory_space<vmem>>, vector<1x32x32xf32>
      %56 = vector.shape_cast %55 : vector<1x32x32xf32> to vector<32x32xf32>
      %57 = vector.shape_cast %54 : vector<32x32xf32> to vector<1x32x32xf32>
      tpu.vector_store %arg5[%c2_45, %c0_46, %c0_47], %57 {strides = array<i32>} : memref<3x32x32xf32, #tpu.memory_space<vmem>>, vector<1x32x32xf32>,
    } else {
    }
    return
  }
  func.func @transform_0(%arg0: i32, %arg1: i32) -> (i32, i32, i32) {
    %c0_i32 = arith.constant 0 : i32
    %c0_i32_0 = arith.constant 0 : i32
    %c0_i32_1 = arith.constant 0 : i32
    return %c0_i32, %arg1, %c0_i32_0 : i32, i32, i32
  }
  func.func @transform_1(%arg0: i32, %arg1: i32) -> (i32, i32) {
    %c0_i32 = arith.constant 0 : i32
    return %arg0, %arg1 : i32, i32
  }
  func.func @transform_2(%arg0: i32, %arg1: i32) -> (i32, i32) {
    %c0_i32 = arith.constant 0 : i32
    %c0_i32_0 = arith.constant 0 : i32
    %c0_i32_1 = arith.constant 0 : i32
    return %c0_i32, %c0_i32_0 : i32, i32
  }
  func.func @transform_3(%arg0: i32, %arg1: i32) -> (i32, i32, i32) {
    %c0_i32 = arith.constant 0 : i32
    %c0_i32_0 = arith.constant 0 : i32
    %c0_i32_1 = arith.constant 0 : i32
    return %c0_i32, %arg0, %c0_i32_0 : i32, i32, i32
  }
}

module attributes {stable_mosaic.version = 11 : i64} {
  func.func @kernel(%arg0: i32, %arg1: i32, %arg2: memref<3x16x16xf32, #tpu.memory_space<vmem>>, %arg3: memref<32x16xbf16, #tpu.memory_space<vmem>>, %arg4: memref<16x32xbf16, #tpu.memory_space<vmem>>, %arg5: memref<3x32x32xf32, #tpu.memory_space<vmem>>, %arg6: memref<3x32x16xf32, #tpu.memory_space<vmem>>) attributes {dimension_semantics = [#tpu.dimension_semantics<parallel>, #tpu.dimension_semantics<arbitrary>], iteration_bounds = array<i64: 1, 1>, scalar_prefetch = 0 : i64, scratch_operands = 1 : i64, tpu.core_type = #tpu.core_type<tc>, window_params = [{transform_indices = @transform_0, window_bounds = array<i64: 3, 16, 16>}, {transform_indices = @transform_1, window_bounds = array<i64: 32, 16>}, {pipeline_mode = #tpu.pipeline_mode<synchronous>, transform_indices = @transform_2, window_bounds = array<i64: 16, 32>}, {transform_indices = @transform_3, window_bounds = array<i64: 3, 32, 32>}]} {
    %c0_i32 = arith.constant 0 : i32
    %0 = arith.cmpi eq, %arg1, %c0_i32 : i32
    %1 = arith.extui %0 : i1 to i32
    %c0_i32_0 = arith.constant 0 : i32
    %2 = arith.cmpi ne, %1, %c0_i32_0 : i32
    scf.if %2 {
      %cst_25 = arith.constant 0.000000e+00 : f32
      %36 = vector.broadcast %cst_25 : f32 to vector<3x32x16xf32>
      %c0_26 = arith.constant 0 : index
      %c0_27 = arith.constant 0 : index
      %c0_28 = arith.constant 0 : index
      %37 = vector.load %arg6[%c0_26, %c0_27, %c0_28] : memref<3x32x16xf32, #tpu.memory_space<vmem>>, vector<3x32x16xf32>
      tpu.vector_store %arg6[%c0_26, %c0_27, %c0_28], %36 {strides = array<i32>} : memref<3x32x16xf32, #tpu.memory_space<vmem>>, vector<3x32x16xf32>,
    } else {
    }
    %c0 = arith.constant 0 : index
    %c0_1 = arith.constant 0 : index
    %3 = vector.load %arg3[%c0, %c0_1] : memref<32x16xbf16, #tpu.memory_space<vmem>>, vector<32x16xbf16>
    %c0_2 = arith.constant 0 : index
    %c0_3 = arith.constant 0 : index
    %c0_4 = arith.constant 0 : index
    %4 = vector.load %arg2[%c0_2, %c0_3, %c0_4] : memref<3x16x16xf32, #tpu.memory_space<vmem>>, vector<3x16x16xf32>
    %5 = arith.truncf %4 : vector<3x16x16xf32> to vector<3x16x16xbf16>
    %c0_5 = arith.constant 0 : index
    %c0_6 = arith.constant 0 : index
    %c0_7 = arith.constant 0 : index
    %6 = vector.load %arg6[%c0_5, %c0_6, %c0_7] : memref<3x32x16xf32, #tpu.memory_space<vmem>>, vector<1x32x16xf32>
    %7 = vector.shape_cast %6 : vector<1x32x16xf32> to vector<32x16xf32>
    %8 = vector.extract_strided_slice %5 {offsets = [0, 0, 0], sizes = [1, 16, 16], strides = [1, 1, 1]} : vector<3x16x16xbf16> to vector<1x16x16xbf16>
    %9 = vector.shape_cast %8 : vector<1x16x16xbf16> to vector<16x16xbf16>
    %cst = arith.constant dense<0.000000e+00> : vector<32x16xf32>
    %10 = tpu.matmul %3, %9, %cst {dimension_numbers = #tpu.dot_dimension_numbers<[1], [0], [0], [1], [0, 0, 1, 1], [], []>} : vector<32x16xbf16>, vector<16x16xbf16>, vector<32x16xf32> -> vector<32x16xf32>
    %11 = arith.addf %7, %10 : vector<32x16xf32>
    %c0_8 = arith.constant 0 : index
    %c0_9 = arith.constant 0 : index
    %c0_10 = arith.constant 0 : index
    %12 = vector.load %arg6[%c0_8, %c0_9, %c0_10] : memref<3x32x16xf32, #tpu.memory_space<vmem>>, vector<1x32x16xf32>
    %13 = vector.shape_cast %12 : vector<1x32x16xf32> to vector<32x16xf32>
    %14 = vector.shape_cast %11 : vector<32x16xf32> to vector<1x32x16xf32>
    tpu.vector_store %arg6[%c0_8, %c0_9, %c0_10], %14 {strides = array<i32>} : memref<3x32x16xf32, #tpu.memory_space<vmem>>, vector<1x32x16xf32>,
    %c1 = arith.constant 1 : index
    %c0_11 = arith.constant 0 : index
    %c0_12 = arith.constant 0 : index
    %15 = vector.load %arg6[%c1, %c0_11, %c0_12] : memref<3x32x16xf32, #tpu.memory_space<vmem>>, vector<1x32x16xf32>
    %16 = vector.shape_cast %15 : vector<1x32x16xf32> to vector<32x16xf32>
    %17 = vector.extract_strided_slice %5 {offsets = [1, 0, 0], sizes = [1, 16, 16], strides = [1, 1, 1]} : vector<3x16x16xbf16> to vector<1x16x16xbf16>
    %18 = vector.shape_cast %17 : vector<1x16x16xbf16> to vector<16x16xbf16>
    %cst_13 = arith.constant dense<0.000000e+00> : vector<32x16xf32>
    %19 = tpu.matmul %3, %18, %cst_13 {dimension_numbers = #tpu.dot_dimension_numbers<[1], [0], [0], [1], [0, 0, 1, 1], [], []>} : vector<32x16xbf16>, vector<16x16xbf16>, vector<32x16xf32> -> vector<32x16xf32>
    %20 = arith.addf %16, %19 : vector<32x16xf32>
    %c1_14 = arith.constant 1 : index
    %c0_15 = arith.constant 0 : index
    %c0_16 = arith.constant 0 : index
    %21 = vector.load %arg6[%c1_14, %c0_15, %c0_16] : memref<3x32x16xf32, #tpu.memory_space<vmem>>, vector<1x32x16xf32>
    %22 = vector.shape_cast %21 : vector<1x32x16xf32> to vector<32x16xf32>
    %23 = vector.shape_cast %20 : vector<32x16xf32> to vector<1x32x16xf32>
    tpu.vector_store %arg6[%c1_14, %c0_15, %c0_16], %23 {strides = array<i32>} : memref<3x32x16xf32, #tpu.memory_space<vmem>>, vector<1x32x16xf32>,
    %c2 = arith.constant 2 : index
    %c0_17 = arith.constant 0 : index
    %c0_18 = arith.constant 0 : index
    %24 = vector.load %arg6[%c2, %c0_17, %c0_18] : memref<3x32x16xf32, #tpu.memory_space<vmem>>, vector<1x32x16xf32>
    %25 = vector.shape_cast %24 : vector<1x32x16xf32> to vector<32x16xf32>
    %26 = vector.extract_strided_slice %5 {offsets = [2, 0, 0], sizes = [1, 16, 16], strides = [1, 1, 1]} : vector<3x16x16xbf16> to vector<1x16x16xbf16>
    %27 = vector.shape_cast %26 : vector<1x16x16xbf16> to vector<16x16xbf16>
    %cst_19 = arith.constant dense<0.000000e+00> : vector<32x16xf32>
    %28 = tpu.matmul %3, %27, %cst_19 {dimension_numbers = #tpu.dot_dimension_numbers<[1], [0], [0], [1], [0, 0, 1, 1], [], []>} : vector<32x16xbf16>, vector<16x16xbf16>, vector<32x16xf32> -> vector<32x16xf32>
    %29 = arith.addf %25, %28 : vector<32x16xf32>
    %c2_20 = arith.constant 2 : index
    %c0_21 = arith.constant 0 : index
    %c0_22 = arith.constant 0 : index
    %30 = vector.load %arg6[%c2_20, %c0_21, %c0_22] : memref<3x32x16xf32, #tpu.memory_space<vmem>>, vector<1x32x16xf32>
    %31 = vector.shape_cast %30 : vector<1x32x16xf32> to vector<32x16xf32>
    %32 = vector.shape_cast %29 : vector<32x16xf32> to vector<1x32x16xf32>
    tpu.vector_store %arg6[%c2_20, %c0_21, %c0_22], %32 {strides = array<i32>} : memref<3x32x16xf32, #tpu.memory_space<vmem>>, vector<1x32x16xf32>,
    %c0_i32_23 = arith.constant 0 : i32
    %33 = arith.cmpi eq, %arg1, %c0_i32_23 : i32
    %34 = arith.extui %33 : i1 to i32
    %c0_i32_24 = arith.constant 0 : i32
    %35 = arith.cmpi ne, %34, %c0_i32_24 : i32
    scf.if %35 {
      %c0_25 = arith.constant 0 : index
      %c0_26 = arith.constant 0 : index
      %36 = vector.load %arg4[%c0_25, %c0_26] : memref<16x32xbf16, #tpu.memory_space<vmem>>, vector<16x32xbf16>
      %c0_27 = arith.constant 0 : index
      %c0_28 = arith.constant 0 : index
      %c0_29 = arith.constant 0 : index
      %37 = vector.load %arg6[%c0_27, %c0_28, %c0_29] : memref<3x32x16xf32, #tpu.memory_space<vmem>>, vector<1x32x16xf32>
      %38 = vector.shape_cast %37 : vector<1x32x16xf32> to vector<32x16xf32>
      %39 = arith.truncf %38 : vector<32x16xf32> to vector<32x16xbf16>
      %cst_30 = arith.constant dense<0.000000e+00> : vector<32x32xf32>
      %40 = tpu.matmul %39, %36, %cst_30 {dimension_numbers = #tpu.dot_dimension_numbers<[1], [0], [0], [1], [0, 0, 1, 1], [], []>} : vector<32x16xbf16>, vector<16x32xbf16>, vector<32x32xf32> -> vector<32x32xf32>
      %c0_31 = arith.constant 0 : index
      %c0_32 = arith.constant 0 : index
      %c0_33 = arith.constant 0 : index
      %41 = vector.load %arg5[%c0_31, %c0_32, %c0_33] : memref<3x32x32xf32, #tpu.memory_space<vmem>>, vector<1x32x32xf32>
      %42 = vector.shape_cast %41 : vector<1x32x32xf32> to vector<32x32xf32>
      %43 = vector.shape_cast %40 : vector<32x32xf32> to vector<1x32x32xf32>
      tpu.vector_store %arg5[%c0_31, %c0_32, %c0_33], %43 {strides = array<i32>} : memref<3x32x32xf32, #tpu.memory_space<vmem>>, vector<1x32x32xf32>,
      %c1_34 = arith.constant 1 : index
      %c0_35 = arith.constant 0 : index
      %c0_36 = arith.constant 0 : index
      %44 = vector.load %arg6[%c1_34, %c0_35, %c0_36] : memref<3x32x16xf32, #tpu.memory_space<vmem>>, vector<1x32x16xf32>
      %45 = vector.shape_cast %44 : vector<1x32x16xf32> to vector<32x16xf32>
      %46 = arith.truncf %45 : vector<32x16xf32> to vector<32x16xbf16>
      %cst_37 = arith.constant dense<0.000000e+00> : vector<32x32xf32>
      %47 = tpu.matmul %46, %36, %cst_37 {dimension_numbers = #tpu.dot_dimension_numbers<[1], [0], [0], [1], [0, 0, 1, 1], [], []>} : vector<32x16xbf16>, vector<16x32xbf16>, vector<32x32xf32> -> vector<32x32xf32>
      %c1_38 = arith.constant 1 : index
      %c0_39 = arith.constant 0 : index
      %c0_40 = arith.constant 0 : index
      %48 = vector.load %arg5[%c1_38, %c0_39, %c0_40] : memref<3x32x32xf32, #tpu.memory_space<vmem>>, vector<1x32x32xf32>
      %49 = vector.shape_cast %48 : vector<1x32x32xf32> to vector<32x32xf32>
      %50 = vector.shape_cast %47 : vector<32x32xf32> to vector<1x32x32xf32>
      tpu.vector_store %arg5[%c1_38, %c0_39, %c0_40], %50 {strides = array<i32>} : memref<3x32x32xf32, #tpu.memory_space<vmem>>, vector<1x32x32xf32>,
      %c2_41 = arith.constant 2 : index
      %c0_42 = arith.constant 0 : index
      %c0_43 = arith.constant 0 : index
      %51 = vector.load %arg6[%c2_41, %c0_42, %c0_43] : memref<3x32x16xf32, #tpu.memory_space<vmem>>, vector<1x32x16xf32>
      %52 = vector.shape_cast %51 : vector<1x32x16xf32> to vector<32x16xf32>
      %53 = arith.truncf %52 : vector<32x16xf32> to vector<32x16xbf16>
      %cst_44 = arith.constant dense<0.000000e+00> : vector<32x32xf32>
      %54 = tpu.matmul %53, %36, %cst_44 {dimension_numbers = #tpu.dot_dimension_numbers<[1], [0], [0], [1], [0, 0, 1, 1], [], []>} : vector<32x16xbf16>, vector<16x32xbf16>, vector<32x32xf32> -> vector<32x32xf32>
      %c2_45 = arith.constant 2 : index
      %c0_46 = arith.constant 0 : index
      %c0_47 = arith.constant 0 : index
      %55 = vector.load %arg5[%c2_45, %c0_46, %c0_47] : memref<3x32x32xf32, #tpu.memory_space<vmem>>, vector<1x32x32xf32>
      %56 = vector.shape_cast %55 : vector<1x32x32xf32> to vector<32x32xf32>
      %57 = vector.shape_cast %54 : vector<32x32xf32> to vector<1x32x32xf32>
      tpu.vector_store %arg5[%c2_45, %c0_46, %c0_47], %57 {strides = array<i32>} : memref<3x32x32xf32, #tpu.memory_space<vmem>>, vector<1x32x32xf32>,
    } else {
    }
    return
  }
  func.func @transform_0(%arg0: i32, %arg1: i32) -> (i32, i32, i32) {
    %c0_i32 = arith.constant 0 : i32
    %c0_i32_0 = arith.constant 0 : i32
    %c0_i32_1 = arith.constant 0 : i32
    return %c0_i32, %arg1, %c0_i32_0 : i32, i32, i32
  }
  func.func @transform_1(%arg0: i32, %arg1: i32) -> (i32, i32) {
    %c0_i32 = arith.constant 0 : i32
    return %arg0, %arg1 : i32, i32
  }
  func.func @transform_2(%arg0: i32, %arg1: i32) -> (i32, i32) {
    %c0_i32 = arith.constant 0 : i32
    %c0_i32_0 = arith.constant 0 : i32
    %c0_i32_1 = arith.constant 0 : i32
    return %c0_i32, %c0_i32_0 : i32, i32
  }
  func.func @transform_3(%arg0: i32, %arg1: i32) -> (i32, i32, i32) {
    %c0_i32 = arith.constant 0 : i32
    %c0_i32_0 = arith.constant 0 : i32
    %c0_i32_1 = arith.constant 0 : i32
    return %c0_i32, %arg0, %c0_i32_0 : i32, i32, i32
  }
}

</mosaic_0001>

<llo_original>
// kernel: tpu_custom_call.1
$region0: #{tpu_custom_call.1}
  #allocation0 [shape = 'u32[]', space=smem, size = 0x4, offset = 0x4, fixed_abs, tag = 'smem constant byte address 0x4 - core index']
  #allocation1 [shape = 'u32[144,128]{1,0:T(1,128)}', space=vmem, size = 0x12000, scoped, tag = 'internal scratch']
  #allocation2 [shape = 'f32[3,32,16]{2,1,0:T(8,128)}', space=vmem, size = 0xc000, scoped, tag = 'scratch operand']
  %s0 = inlined_call_operand.hbm [shape: f32[3,16,16], index: 0, kind: input, shape index: {}]
  %s1 = inlined_call_operand.vmem [shape: bf16[32,16], index: 1, kind: input, shape index: {}]
  %s2 = inlined_call_operand.vmem [shape: bf16[16,32], index: 2, kind: input, shape index: {}]
  %s3 = inlined_call_operand.hbm [shape: f32[3,32,32], index: 3, kind: output, shape index: {}]
  %s4 = sld [smem:[#allocation0]]
  $region34: #{tpu_custom_call.1} parent=0
    _
  %s6 = ssub.s32 1, %s4
  %s7 = scalar_select 0, %s6, %s4
  $region1: #{tpu_custom_call.1} parent=0
    #allocation3 [shape = 'u8[24576]{0}', space=vmem, size = 0x6000, scoped, tag = 'input window, operand 0, single buffered']
    #allocation4 [shape = 's32[1]{0}', space=sflag, size = 0x4, scoped, tag = 'scoped memory for tpu_custom_call.1']
    #allocation5 [shape = 's32[1]{0}', space=sflag, size = 0x4, scoped, tag = 'scoped memory for tpu_custom_call.1']
    #allocation6 [shape = 'u8[49152]{0}', space=vmem, size = 0xc000, scoped, tag = 'output window, operand 0, single buffered']
    %8 = vsyncpa [#allocation4], 0
    %9 = vsyncpa [#allocation5], 0
    // Predicated region
    $region2: #{tpu_custom_call.1} parent=1 // pred_check
      _
    $region3: #{tpu_custom_call.1} parent=1 // pred_check_branch
      %11 = sbr.rel (0) target = $region5
    $region4: #{tpu_custom_call.1} parent=1 // pred_region
      %s13 = ssub.s32 768, 768
      %14 = vsyncadd [#allocation4], %s13
      %s15 = sshll.u32 [#allocation3], 4
      %s16 = int_to_ptr.vmem [resolvable:$true] %s15
      %21 = dma.hbm_to_vmem [thread:$0]  %s0, 768, %s16, [#allocation4], 128, 128, 8
    $region5: #{tpu_custom_call.1} parent=1 // pred_fallthru
      _
    // Predicated region
    $region6: #{tpu_custom_call.1} parent=1 // pred_check
      _
    $region7: #{tpu_custom_call.1} parent=1 // pred_check_branch
      %23 = sbr.rel (0) target = $region9
    $region8: #{tpu_custom_call.1} parent=1 // pred_region
      _
    $region9: #{tpu_custom_call.1} parent=1 // pred_fallthru
      _
    // Predicated region
    $region10: #{tpu_custom_call.1} parent=1 // pred_check
      _
    $region11: #{tpu_custom_call.1} parent=1 // pred_check_branch
      %25 = sbr.rel (0) target = $region13
    $region12: #{tpu_custom_call.1} parent=1 // pred_region
      _
    $region13: #{tpu_custom_call.1} parent=1 // pred_fallthru
      _
    // Predicated region
    $region14: #{tpu_custom_call.1} parent=1 // pred_check
      _
    $region15: #{tpu_custom_call.1} parent=1 // pred_check_branch
      %27 = sbr.rel (0) target = $region17
    $region16: #{tpu_custom_call.1} parent=1 // pred_region
      %28 = dma.done [#allocation4], 768
    $region17: #{tpu_custom_call.1} parent=1 // pred_fallthru
      _
    %p30 = scmp.eq.s32.totalorder 0, 0
    // Predicated region
    $region18: #{tpu_custom_call.1} parent=1 // pred_check
      %p31 = pneg %p30
    $region19: #{tpu_custom_call.1} parent=1 // pred_check_branch
      %33 = sbr.rel (%p31) target = $region21
    $region20: #{tpu_custom_call.1} parent=1 // pred_region
      %vm34 = vcmask 130048
      %35 = vst.msk [vmem:[#allocation2] sm:$0xff] %vm34, 0.0
      %36 = vst.msk [vmem:[#allocation2 + $0x8] sm:$0xff] %vm34, 0.0
      %37 = vst.msk [vmem:[#allocation2 + $0x10] sm:$0xff] %vm34, 0.0
      %38 = vst.msk [vmem:[#allocation2 + $0x18] sm:$0xff] %vm34, 0.0
      %39 = vst.msk [vmem:[#allocation2 + $0x20] sm:$0xff] %vm34, 0.0
      %40 = vst.msk [vmem:[#allocation2 + $0x28] sm:$0xff] %vm34, 0.0
      %41 = vst.msk [vmem:[#allocation2 + $0x30] sm:$0xff] %vm34, 0.0
      %42 = vst.msk [vmem:[#allocation2 + $0x38] sm:$0xff] %vm34, 0.0
      %43 = vst.msk [vmem:[#allocation2 + $0x40] sm:$0xff] %vm34, 0.0
      %44 = vst.msk [vmem:[#allocation2 + $0x48] sm:$0xff] %vm34, 0.0
      %45 = vst.msk [vmem:[#allocation2 + $0x50] sm:$0xff] %vm34, 0.0
      %46 = vst.msk [vmem:[#allocation2 + $0x58] sm:$0xff] %vm34, 0.0
    $region21: #{tpu_custom_call.1} parent=1 // pred_fallthru
      _
    %v47 = vld [vmem:[%s1] sm:$0xf]
    %v48 = vld [vmem:[%s1 + $0x4] sm:$0xf]
    %v49 = vld [vmem:[%s1 + $0x8] sm:$0xf]
    %v50 = vld [vmem:[%s1 + $0xc] sm:$0xf]
    %v51 = vld [vmem:[#allocation3] sm:$0xff]
    %v52 = vld [vmem:[#allocation3 + $0x8] sm:$0xff]
    %v53 = vld [vmem:[#allocation3 + $0x10] sm:$0xff]
    %v54 = vld [vmem:[#allocation3 + $0x18] sm:$0xff]
    %v55 = vld [vmem:[#allocation3 + $0x20] sm:$0xff]
    %v56 = vld [vmem:[#allocation3 + $0x28] sm:$0xff]
    %v57 = vpack.c.bf16 %v52, %v51
    %v58 = vpack.c.bf16 %v54, %v53
    %v59 = vpack.c.bf16 %v56, %v55
    %v60 = vld [vmem:[#allocation2] sm:$0xff]
    %v61 = vld [vmem:[#allocation2 + $0x8] sm:$0xff]
    %v62 = vld [vmem:[#allocation2 + $0x10] sm:$0xff]
    %v63 = vld [vmem:[#allocation2 + $0x18] sm:$0xff]
    %v68 = vunpack.c.l.b16 %v47
    %v69 = vunpack.c.l.b16 %v48
    %v70 = vunpack.c.l.b16 %v49
    %v71 = vunpack.c.l.b16 %v50
    %v72 = vpack.c.b16 %v69, %v68
    %v73 = vpack.c.b16 %v71, %v70
    %vm74 = vcmask 130048
    %v76 = vsel %vm74, %v72, 0
    %v79 = vsel %vm74, %v73, 0
    %81 = vmatprep.subr.bf16.mxu0 0
    %82 = vmatpush1.bf16.msra.mxu0 0
    %83 = vmatprep.subr.bf16.mxu0 0
    %84 = vmatpush1.bf16.msra.mxu0 0
    %85 = vmatprep.subr.bf16.mxu0 0
    %86 = vmatpush1.bf16.msra.mxu0 0
    %87 = vmatprep.subr.bf16.mxu0 0
    %88 = vmatpush1.bf16.msra.mxu0 0
    %89 = vmatprep.subr.bf16.mxu0 0
    %90 = vmatpush1.bf16.msra.mxu0 0
    %91 = vmatprep.subr.bf16.mxu0 0
    %92 = vmatpush1.bf16.msra.mxu0 0
    %93 = vmatprep.subr.bf16.mxu0 0
    %94 = vmatpush1.bf16.msra.mxu0 0
    %95 = vmatprep.subr.bf16.mxu0 0
    %96 = vmatpush1.bf16.msra.mxu0 %v57
    %97 = vmatprep.subr.bf16.mxu0 0
    %98 = vmatpush2.bf16.msra.mxu0 0
    %99 = vmatprep.subr.bf16.mxu0 0
    %100 = vmatpush2.bf16.msra.mxu0 0
    %101 = vmatprep.subr.bf16.mxu0 0
    %102 = vmatpush2.bf16.msra.mxu0 0
    %103 = vmatprep.subr.bf16.mxu0 0
    %104 = vmatpush2.bf16.msra.mxu0 0
    %105 = vmatprep.subr.bf16.mxu0 0
    %106 = vmatpush2.bf16.msra.mxu0 0
    %107 = vmatprep.subr.bf16.mxu0 0
    %108 = vmatpush2.bf16.msra.mxu0 0
    %109 = vmatprep.subr.bf16.mxu0 0
    %110 = vmatpush2.bf16.msra.mxu0 0
    %111 = vmatprep.subr.bf16.mxu0 0
    %112 = vmatpush2.bf16.msra.mxu0 0
    %113 = vmatprep.mubr.bf16.mxu0 0
    %114 = vmatmul.mubr.bf16.gmra.mxu0 %v76
    %v115 = vpop.f32.mrf.mxu0
    %v116 = vadd.f32 0.0, %v115
    %v117 = vpop.f32.mrf.mxu0
    %v118 = vpop.f32.mrf.mxu0
    %v119 = vadd.f32 0.0, %v118
    %v120 = vpop.f32.mrf.mxu0
    %121 = vmatprep.mubr.bf16.mxu0 0
    %122 = vmatmul.mubr.bf16.gmra.mxu0 %v79
    %v123 = vpop.f32.mrf.mxu0
    %v124 = vadd.f32 0.0, %v123
    %v125 = vpop.f32.mrf.mxu0
    %v126 = vpop.f32.mrf.mxu0
    %v127 = vadd.f32 0.0, %v126
    %v128 = vpop.f32.mrf.mxu0
    %129 = vdwg.mxu0
    %v130 = vadd.f32 %v60, %v116
    %v131 = vadd.f32 %v61, %v119
    %v132 = vadd.f32 %v62, %v124
    %v133 = vadd.f32 %v63, %v127
    %134 = vst.msk [vmem:[#allocation2] sm:$0xff] %vm74, %v130
    %135 = vst.msk [vmem:[#allocation2 + $0x8] sm:$0xff] %vm74, %v131
    %136 = vst.msk [vmem:[#allocation2 + $0x10] sm:$0xff] %vm74, %v132
    %137 = vst.msk [vmem:[#allocation2 + $0x18] sm:$0xff] %vm74, %v133
    %s138 = scalar_lea.vmem [#allocation2], 32
    %v139 = vld [vmem:[%s138] sm:$0xff]
    %v140 = vld [vmem:[%s138 + $0x8] sm:$0xff]
    %v141 = vld [vmem:[%s138 + $0x10] sm:$0xff]
    %v142 = vld [vmem:[%s138 + $0x18] sm:$0xff]
    %143 = vmatprep.subr.bf16.mxu0 0
    %144 = vmatpush1.bf16.msra.mxu0 0
    %145 = vmatprep.subr.bf16.mxu0 0
    %146 = vmatpush1.bf16.msra.mxu0 0
    %147 = vmatprep.subr.bf16.mxu0 0
    %148 = vmatpush1.bf16.msra.mxu0 0
    %149 = vmatprep.subr.bf16.mxu0 0
    %150 = vmatpush1.bf16.msra.mxu0 0
    %151 = vmatprep.subr.bf16.mxu0 0
    %152 = vmatpush1.bf16.msra.mxu0 0
    %153 = vmatprep.subr.bf16.mxu0 0
    %154 = vmatpush1.bf16.msra.mxu0 0
    %155 = vmatprep.subr.bf16.mxu0 0
    %156 = vmatpush1.bf16.msra.mxu0 0
    %157 = vmatprep.subr.bf16.mxu0 0
    %158 = vmatpush1.bf16.msra.mxu0 %v58
    %159 = vmatprep.subr.bf16.mxu0 0
    %160 = vmatpush2.bf16.msra.mxu0 0
    %161 = vmatprep.subr.bf16.mxu0 0
    %162 = vmatpush2.bf16.msra.mxu0 0
    %163 = vmatprep.subr.bf16.mxu0 0
    %164 = vmatpush2.bf16.msra.mxu0 0
    %165 = vmatprep.subr.bf16.mxu0 0
    %166 = vmatpush2.bf16.msra.mxu0 0
    %167 = vmatprep.subr.bf16.mxu0 0
    %168 = vmatpush2.bf16.msra.mxu0 0
    %169 = vmatprep.subr.bf16.mxu0 0
    %170 = vmatpush2.bf16.msra.mxu0 0
    %171 = vmatprep.subr.bf16.mxu0 0
    %172 = vmatpush2.bf16.msra.mxu0 0
    %173 = vmatprep.subr.bf16.mxu0 0
    %174 = vmatpush2.bf16.msra.mxu0 0
    %175 = vmatprep.mubr.bf16.mxu0 0
    %176 = vmatmul.mubr.bf16.gmra.mxu0 %v76
    %v177 = vpop.f32.mrf.mxu0
    %v178 = vadd.f32 0.0, %v177
    %v179 = vpop.f32.mrf.mxu0
    %v180 = vpop.f32.mrf.mxu0
    %v181 = vadd.f32 0.0, %v180
    %v182 = vpop.f32.mrf.mxu0
    %183 = vmatprep.mubr.bf16.mxu0 0
    %184 = vmatmul.mubr.bf16.gmra.mxu0 %v79
    %v185 = vpop.f32.mrf.mxu0
    %v186 = vadd.f32 0.0, %v185
    %v187 = vpop.f32.mrf.mxu0
    %v188 = vpop.f32.mrf.mxu0
    %v189 = vadd.f32 0.0, %v188
    %v190 = vpop.f32.mrf.mxu0
    %191 = vdwg.mxu0
    %v192 = vadd.f32 %v139, %v178
    %v193 = vadd.f32 %v140, %v181
    %v194 = vadd.f32 %v141, %v186
    %v195 = vadd.f32 %v142, %v189
    %196 = vst.msk [vmem:[%s138] sm:$0xff] %vm74, %v192
    %197 = vst.msk [vmem:[%s138 + $0x8] sm:$0xff] %vm74, %v193
    %198 = vst.msk [vmem:[%s138 + $0x10] sm:$0xff] %vm74, %v194
    %199 = vst.msk [vmem:[%s138 + $0x18] sm:$0xff] %vm74, %v195
    %s200 = scalar_lea.vmem [#allocation2], 64
    %v201 = vld [vmem:[%s200] sm:$0xff]
    %v202 = vld [vmem:[%s200 + $0x8] sm:$0xff]
    %v203 = vld [vmem:[%s200 + $0x10] sm:$0xff]
    %v204 = vld [vmem:[%s200 + $0x18] sm:$0xff]
    %205 = vmatprep.subr.bf16.mxu0 0
    %206 = vmatpush1.bf16.msra.mxu0 0
    %207 = vmatprep.subr.bf16.mxu0 0
    %208 = vmatpush1.bf16.msra.mxu0 0
    %209 = vmatprep.subr.bf16.mxu0 0
    %210 = vmatpush1.bf16.msra.mxu0 0
    %211 = vmatprep.subr.bf16.mxu0 0
    %212 = vmatpush1.bf16.msra.mxu0 0
    %213 = vmatprep.subr.bf16.mxu0 0
    %214 = vmatpush1.bf16.msra.mxu0 0
    %215 = vmatprep.subr.bf16.mxu0 0
    %216 = vmatpush1.bf16.msra.mxu0 0
    %217 = vmatprep.subr.bf16.mxu0 0
    %218 = vmatpush1.bf16.msra.mxu0 0
    %219 = vmatprep.subr.bf16.mxu0 0
    %220 = vmatpush1.bf16.msra.mxu0 %v59
    %221 = vmatprep.subr.bf16.mxu0 0
    %222 = vmatpush2.bf16.msra.mxu0 0
    %223 = vmatprep.subr.bf16.mxu0 0
    %224 = vmatpush2.bf16.msra.mxu0 0
    %225 = vmatprep.subr.bf16.mxu0 0
    %226 = vmatpush2.bf16.msra.mxu0 0
    %227 = vmatprep.subr.bf16.mxu0 0
    %228 = vmatpush2.bf16.msra.mxu0 0
    %229 = vmatprep.subr.bf16.mxu0 0
    %230 = vmatpush2.bf16.msra.mxu0 0
    %231 = vmatprep.subr.bf16.mxu0 0
    %232 = vmatpush2.bf16.msra.mxu0 0
    %233 = vmatprep.subr.bf16.mxu0 0
    %234 = vmatpush2.bf16.msra.mxu0 0
    %235 = vmatprep.subr.bf16.mxu0 0
    %236 = vmatpush2.bf16.msra.mxu0 0
    %237 = vmatprep.mubr.bf16.mxu0 0
    %238 = vmatmul.mubr.bf16.gmra.mxu0 %v76
    %v239 = vpop.f32.mrf.mxu0
    %v240 = vadd.f32 0.0, %v239
    %v241 = vpop.f32.mrf.mxu0
    %v242 = vpop.f32.mrf.mxu0
    %v243 = vadd.f32 0.0, %v242
    %v244 = vpop.f32.mrf.mxu0
    %245 = vmatprep.mubr.bf16.mxu0 0
    %246 = vmatmul.mubr.bf16.gmra.mxu0 %v79
    %v247 = vpop.f32.mrf.mxu0
    %v248 = vadd.f32 0.0, %v247
    %v249 = vpop.f32.mrf.mxu0
    %v250 = vpop.f32.mrf.mxu0
    %v251 = vadd.f32 0.0, %v250
    %v252 = vpop.f32.mrf.mxu0
    %253 = vdwg.mxu0
    %v254 = vadd.f32 %v201, %v240
    %v255 = vadd.f32 %v202, %v243
    %v256 = vadd.f32 %v203, %v248
    %v257 = vadd.f32 %v204, %v251
    %258 = vst.msk [vmem:[%s200] sm:$0xff] %vm74, %v254
    %259 = vst.msk [vmem:[%s200 + $0x8] sm:$0xff] %vm74, %v255
    %260 = vst.msk [vmem:[%s200 + $0x10] sm:$0xff] %vm74, %v256
    %261 = vst.msk [vmem:[%s200 + $0x18] sm:$0xff] %vm74, %v257
    // Predicated region
    $region22: #{tpu_custom_call.1} parent=1 // pred_check
      %p262 = pneg %p30
    $region23: #{tpu_custom_call.1} parent=1 // pred_check_branch
      %264 = sbr.rel (%p262) target = $region25
    $region24: #{tpu_custom_call.1} parent=1 // pred_region
      %v265 = vld [vmem:[%s2] sm:$0xf]
      %v266 = vld [vmem:[%s2 + $0x4] sm:$0xf]
      %v267 = vld [vmem:[#allocation2] sm:$0xff]
      %v268 = vld [vmem:[#allocation2 + $0x8] sm:$0xff]
      %v269 = vld [vmem:[#allocation2 + $0x10] sm:$0xff]
      %v270 = vld [vmem:[#allocation2 + $0x18] sm:$0xff]
      %v271 = vpack.c.bf16 %v268, %v267
      %v272 = vpack.c.bf16 %v270, %v269
      %v275 = vunpack.c.l.b16 %v265
      %v276 = vunpack.c.l.b16 %v266
      %v277 = vpack.c.b16 %v276, %v275
      %v280 = vsel %vm74, %v271, 0
      %v283 = vsel %vm74, %v272, 0
      %285 = vmatprep.subr.bf16.mxu0 0
      %286 = vmatpush1.bf16.msra.mxu0 0
      %287 = vmatprep.subr.bf16.mxu0 0
      %288 = vmatpush1.bf16.msra.mxu0 0
      %289 = vmatprep.subr.bf16.mxu0 0
      %290 = vmatpush1.bf16.msra.mxu0 0
      %291 = vmatprep.subr.bf16.mxu0 0
      %292 = vmatpush1.bf16.msra.mxu0 0
      %293 = vmatprep.subr.bf16.mxu0 0
      %294 = vmatpush1.bf16.msra.mxu0 0
      %295 = vmatprep.subr.bf16.mxu0 0
      %296 = vmatpush1.bf16.msra.mxu0 0
      %297 = vmatprep.subr.bf16.mxu0 0
      %298 = vmatpush1.bf16.msra.mxu0 0
      %299 = vmatprep.subr.bf16.mxu0 0
      %300 = vmatpush1.bf16.msra.mxu0 %v277
      %301 = vmatprep.subr.bf16.mxu0 0
      %302 = vmatpush2.bf16.msra.mxu0 0
      %303 = vmatprep.subr.bf16.mxu0 0
      %304 = vmatpush2.bf16.msra.mxu0 0
      %305 = vmatprep.subr.bf16.mxu0 0
      %306 = vmatpush2.bf16.msra.mxu0 0
      %307 = vmatprep.subr.bf16.mxu0 0
      %308 = vmatpush2.bf16.msra.mxu0 0
      %309 = vmatprep.subr.bf16.mxu0 0
      %310 = vmatpush2.bf16.msra.mxu0 0
      %311 = vmatprep.subr.bf16.mxu0 0
      %312 = vmatpush2.bf16.msra.mxu0 0
      %313 = vmatprep.subr.bf16.mxu0 0
      %314 = vmatpush2.bf16.msra.mxu0 0
      %315 = vmatprep.subr.bf16.mxu0 0
      %316 = vmatpush2.bf16.msra.mxu0 0
      %317 = vmatprep.mubr.bf16.mxu0 0
      %318 = vmatmul.mubr.bf16.gmra.mxu0 %v280
      %v319 = vpop.f32.mrf.mxu0
      %v320 = vadd.f32 0.0, %v319
      %v321 = vpop.f32.mrf.mxu0
      %v322 = vpop.f32.mrf.mxu0
      %v323 = vadd.f32 0.0, %v322
      %v324 = vpop.f32.mrf.mxu0
      %325 = vmatprep.mubr.bf16.mxu0 0
      %326 = vmatmul.mubr.bf16.gmra.mxu0 %v283
      %v327 = vpop.f32.mrf.mxu0
      %v328 = vadd.f32 0.0, %v327
      %v329 = vpop.f32.mrf.mxu0
      %v330 = vpop.f32.mrf.mxu0
      %v331 = vadd.f32 0.0, %v330
      %v332 = vpop.f32.mrf.mxu0
      %333 = vdwg.mxu0
      %vm334 = vcmask 261120
      %335 = vst.msk [vmem:[#allocation6] sm:$0xff] %vm334, %v320
      %336 = vst.msk [vmem:[#allocation6 + $0x8] sm:$0xff] %vm334, %v323
      %337 = vst.msk [vmem:[#allocation6 + $0x10] sm:$0xff] %vm334, %v328
      %338 = vst.msk [vmem:[#allocation6 + $0x18] sm:$0xff] %vm334, %v331
      %v339 = vld [vmem:[%s138] sm:$0xff]
      %v340 = vld [vmem:[%s138 + $0x8] sm:$0xff]
      %v341 = vld [vmem:[%s138 + $0x10] sm:$0xff]
      %v342 = vld [vmem:[%s138 + $0x18] sm:$0xff]
      %v343 = vpack.c.bf16 %v340, %v339
      %v344 = vpack.c.bf16 %v342, %v341
      %v346 = vsel %vm74, %v343, 0
      %v349 = vsel %vm74, %v344, 0
      %351 = vmatprep.subr.bf16.mxu0 0
      %352 = vmatpush1.bf16.msra.mxu0 0
      %353 = vmatprep.subr.bf16.mxu0 0
      %354 = vmatpush1.bf16.msra.mxu0 0
      %355 = vmatprep.subr.bf16.mxu0 0
      %356 = vmatpush1.bf16.msra.mxu0 0
      %357 = vmatprep.subr.bf16.mxu0 0
      %358 = vmatpush1.bf16.msra.mxu0 0
      %359 = vmatprep.subr.bf16.mxu0 0
      %360 = vmatpush1.bf16.msra.mxu0 0
      %361 = vmatprep.subr.bf16.mxu0 0
      %362 = vmatpush1.bf16.msra.mxu0 0
      %363 = vmatprep.subr.bf16.mxu0 0
      %364 = vmatpush1.bf16.msra.mxu0 0
      %365 = vmatprep.subr.bf16.mxu0 0
      %366 = vmatpush1.bf16.msra.mxu0 %v277
      %367 = vmatprep.subr.bf16.mxu0 0
      %368 = vmatpush2.bf16.msra.mxu0 0
      %369 = vmatprep.subr.bf16.mxu0 0
      %370 = vmatpush2.bf16.msra.mxu0 0
      %371 = vmatprep.subr.bf16.mxu0 0
      %372 = vmatpush2.bf16.msra.mxu0 0
      %373 = vmatprep.subr.bf16.mxu0 0
      %374 = vmatpush2.bf16.msra.mxu0 0
      %375 = vmatprep.subr.bf16.mxu0 0
      %376 = vmatpush2.bf16.msra.mxu0 0
      %377 = vmatprep.subr.bf16.mxu0 0
      %378 = vmatpush2.bf16.msra.mxu0 0
      %379 = vmatprep.subr.bf16.mxu0 0
      %380 = vmatpush2.bf16.msra.mxu0 0
      %381 = vmatprep.subr.bf16.mxu0 0
      %382 = vmatpush2.bf16.msra.mxu0 0
      %383 = vmatprep.mubr.bf16.mxu0 0
      %384 = vmatmul.mubr.bf16.gmra.mxu0 %v346
      %v385 = vpop.f32.mrf.mxu0
      %v386 = vadd.f32 0.0, %v385
      %v387 = vpop.f32.mrf.mxu0
      %v388 = vpop.f32.mrf.mxu0
      %v389 = vadd.f32 0.0, %v388
      %v390 = vpop.f32.mrf.mxu0
      %391 = vmatprep.mubr.bf16.mxu0 0
      %392 = vmatmul.mubr.bf16.gmra.mxu0 %v349
      %v393 = vpop.f32.mrf.mxu0
      %v394 = vadd.f32 0.0, %v393
      %v395 = vpop.f32.mrf.mxu0
      %v396 = vpop.f32.mrf.mxu0
      %v397 = vadd.f32 0.0, %v396
      %v398 = vpop.f32.mrf.mxu0
      %399 = vdwg.mxu0
      %s400 = scalar_lea.vmem [#allocation6], 32
      %401 = vst.msk [vmem:[%s400] sm:$0xff] %vm334, %v386
      %402 = vst.msk [vmem:[%s400 + $0x8] sm:$0xff] %vm334, %v389
      %403 = vst.msk [vmem:[%s400 + $0x10] sm:$0xff] %vm334, %v394
      %404 = vst.msk [vmem:[%s400 + $0x18] sm:$0xff] %vm334, %v397
      %v405 = vld [vmem:[%s200] sm:$0xff]
      %v406 = vld [vmem:[%s200 + $0x8] sm:$0xff]
      %v407 = vld [vmem:[%s200 + $0x10] sm:$0xff]
      %v408 = vld [vmem:[%s200 + $0x18] sm:$0xff]
      %v409 = vpack.c.bf16 %v406, %v405
      %v410 = vpack.c.bf16 %v408, %v407
      %v412 = vsel %vm74, %v409, 0
      %v415 = vsel %vm74, %v410, 0
      %417 = vmatprep.subr.bf16.mxu0 0
      %418 = vmatpush1.bf16.msra.mxu0 0
      %419 = vmatprep.subr.bf16.mxu0 0
      %420 = vmatpush1.bf16.msra.mxu0 0
      %421 = vmatprep.subr.bf16.mxu0 0
      %422 = vmatpush1.bf16.msra.mxu0 0
      %423 = vmatprep.subr.bf16.mxu0 0
      %424 = vmatpush1.bf16.msra.mxu0 0
      %425 = vmatprep.subr.bf16.mxu0 0
      %426 = vmatpush1.bf16.msra.mxu0 0
      %427 = vmatprep.subr.bf16.mxu0 0
      %428 = vmatpush1.bf16.msra.mxu0 0
      %429 = vmatprep.subr.bf16.mxu0 0
      %430 = vmatpush1.bf16.msra.mxu0 0
      %431 = vmatprep.subr.bf16.mxu0 0
      %432 = vmatpush1.bf16.msra.mxu0 %v277
      %433 = vmatprep.subr.bf16.mxu0 0
      %434 = vmatpush2.bf16.msra.mxu0 0
      %435 = vmatprep.subr.bf16.mxu0 0
      %436 = vmatpush2.bf16.msra.mxu0 0
      %437 = vmatprep.subr.bf16.mxu0 0
      %438 = vmatpush2.bf16.msra.mxu0 0
      %439 = vmatprep.subr.bf16.mxu0 0
      %440 = vmatpush2.bf16.msra.mxu0 0
      %441 = vmatprep.subr.bf16.mxu0 0
      %442 = vmatpush2.bf16.msra.mxu0 0
      %443 = vmatprep.subr.bf16.mxu0 0
      %444 = vmatpush2.bf16.msra.mxu0 0
      %445 = vmatprep.subr.bf16.mxu0 0
      %446 = vmatpush2.bf16.msra.mxu0 0
      %447 = vmatprep.subr.bf16.mxu0 0
      %448 = vmatpush2.bf16.msra.mxu0 0
      %449 = vmatprep.mubr.bf16.mxu0 0
      %450 = vmatmul.mubr.bf16.gmra.mxu0 %v412
      %v451 = vpop.f32.mrf.mxu0
      %v452 = vadd.f32 0.0, %v451
      %v453 = vpop.f32.mrf.mxu0
      %v454 = vpop.f32.mrf.mxu0
      %v455 = vadd.f32 0.0, %v454
      %v456 = vpop.f32.mrf.mxu0
      %457 = vmatprep.mubr.bf16.mxu0 0
      %458 = vmatmul.mubr.bf16.gmra.mxu0 %v415
      %v459 = vpop.f32.mrf.mxu0
      %v460 = vadd.f32 0.0, %v459
      %v461 = vpop.f32.mrf.mxu0
      %v462 = vpop.f32.mrf.mxu0
      %v463 = vadd.f32 0.0, %v462
      %v464 = vpop.f32.mrf.mxu0
      %465 = vdwg.mxu0
      %s466 = scalar_lea.vmem [#allocation6], 64
      %467 = vst.msk [vmem:[%s466] sm:$0xff] %vm334, %v452
      %468 = vst.msk [vmem:[%s466 + $0x8] sm:$0xff] %vm334, %v455
      %469 = vst.msk [vmem:[%s466 + $0x10] sm:$0xff] %vm334, %v460
      %470 = vst.msk [vmem:[%s466 + $0x18] sm:$0xff] %vm334, %v463
    $region25: #{tpu_custom_call.1} parent=1 // pred_fallthru
      _
    // Predicated region
    $region26: #{tpu_custom_call.1} parent=1 // pred_check
      _
    $region27: #{tpu_custom_call.1} parent=1 // pred_check_branch
      %472 = sbr.rel (0) target = $region29
    $region28: #{tpu_custom_call.1} parent=1 // pred_region
      %s474 = ssub.s32 1536, 1536
      %475 = vsyncadd [#allocation5], %s474
      %s476 = sshll.u32 [#allocation6], 4
      %s477 = int_to_ptr.vmem [resolvable:$true] %s476
      %482 = dma.vmem_to_hbm [thread:$0]  %s477, 1536, %s3, [#allocation5], 128, 128, 8
    $region29: #{tpu_custom_call.1} parent=1 // pred_fallthru
      _
    // Predicated region
    $region30: #{tpu_custom_call.1} parent=1 // pred_check
      _
    $region31: #{tpu_custom_call.1} parent=1 // pred_check_branch
      %484 = sbr.rel (0) target = $region33
    $region32: #{tpu_custom_call.1} parent=1 // pred_region
      %485 = dma.done [#allocation5], 1536
    $region33: #{tpu_custom_call.1} parent=1 // pred_fallthru
      _
    %486 = vsyncpa [#allocation4], 1
    %487 = vsyncpa [#allocation5], 1

// kernel: tpu_custom_call.1
$region0: #{tpu_custom_call.1}
  #allocation0 [shape = 'u32[]', space=smem, size = 0x4, offset = 0x4, fixed_abs, tag = 'smem constant byte address 0x4 - core index']
  #allocation1 [shape = 'u32[144,128]{1,0:T(1,128)}', space=vmem, size = 0x12000, scoped, tag = 'internal scratch']
  #allocation2 [shape = 'f32[3,32,16]{2,1,0:T(8,128)}', space=vmem, size = 0xc000, scoped, tag = 'scratch operand']
  %s0 = inlined_call_operand.hbm [shape: f32[3,16,16], index: 0, kind: input, shape index: {}]
  %s1 = inlined_call_operand.vmem [shape: bf16[32,16], index: 1, kind: input, shape index: {}]
  %s2 = inlined_call_operand.vmem [shape: bf16[16,32], index: 2, kind: input, shape index: {}]
  %s3 = inlined_call_operand.hbm [shape: f32[3,32,32], index: 3, kind: output, shape index: {}]
  %s4 = sld [smem:[#allocation0]]
  $region34: #{tpu_custom_call.1} parent=0
    _
  %s6 = ssub.s32 1, %s4
  %s7 = scalar_select 0, %s6, %s4
  $region1: #{tpu_custom_call.1} parent=0
    #allocation3 [shape = 'u8[24576]{0}', space=vmem, size = 0x6000, scoped, tag = 'input window, operand 0, single buffered']
    #allocation4 [shape = 's32[1]{0}', space=sflag, size = 0x4, scoped, tag = 'scoped memory for tpu_custom_call.1']
    #allocation5 [shape = 's32[1]{0}', space=sflag, size = 0x4, scoped, tag = 'scoped memory for tpu_custom_call.1']
    #allocation6 [shape = 'u8[49152]{0}', space=vmem, size = 0xc000, scoped, tag = 'output window, operand 0, single buffered']
    %8 = vsyncpa [#allocation4], 0
    %9 = vsyncpa [#allocation5], 0
    // Predicated region
    $region2: #{tpu_custom_call.1} parent=1 // pred_check
      _
    $region3: #{tpu_custom_call.1} parent=1 // pred_check_branch
      %11 = sbr.rel (0) target = $region5
    $region4: #{tpu_custom_call.1} parent=1 // pred_region
      %s13 = ssub.s32 768, 768
      %14 = vsyncadd [#allocation4], %s13
      %s15 = sshll.u32 [#allocation3], 4
      %s16 = int_to_ptr.vmem [resolvable:$true] %s15
      %21 = dma.hbm_to_vmem [thread:$0]  %s0, 768, %s16, [#allocation4], 128, 128, 8
    $region5: #{tpu_custom_call.1} parent=1 // pred_fallthru
      _
    // Predicated region
    $region6: #{tpu_custom_call.1} parent=1 // pred_check
      _
    $region7: #{tpu_custom_call.1} parent=1 // pred_check_branch
      %23 = sbr.rel (0) target = $region9
    $region8: #{tpu_custom_call.1} parent=1 // pred_region
      _
    $region9: #{tpu_custom_call.1} parent=1 // pred_fallthru
      _
    // Predicated region
    $region10: #{tpu_custom_call.1} parent=1 // pred_check
      _
    $region11: #{tpu_custom_call.1} parent=1 // pred_check_branch
      %25 = sbr.rel (0) target = $region13
    $region12: #{tpu_custom_call.1} parent=1 // pred_region
      _
    $region13: #{tpu_custom_call.1} parent=1 // pred_fallthru
      _
    // Predicated region
    $region14: #{tpu_custom_call.1} parent=1 // pred_check
      _
    $region15: #{tpu_custom_call.1} parent=1 // pred_check_branch
      %27 = sbr.rel (0) target = $region17
    $region16: #{tpu_custom_call.1} parent=1 // pred_region
      %28 = dma.done [#allocation4], 768
    $region17: #{tpu_custom_call.1} parent=1 // pred_fallthru
      _
    %p30 = scmp.eq.s32.totalorder 0, 0
    // Predicated region
    $region18: #{tpu_custom_call.1} parent=1 // pred_check
      %p31 = pneg %p30
    $region19: #{tpu_custom_call.1} parent=1 // pred_check_branch
      %33 = sbr.rel (%p31) target = $region21
    $region20: #{tpu_custom_call.1} parent=1 // pred_region
      %vm34 = vcmask 130048
      %35 = vst.msk [vmem:[#allocation2] sm:$0xff] %vm34, 0.0
      %36 = vst.msk [vmem:[#allocation2 + $0x8] sm:$0xff] %vm34, 0.0
      %37 = vst.msk [vmem:[#allocation2 + $0x10] sm:$0xff] %vm34, 0.0
      %38 = vst.msk [vmem:[#allocation2 + $0x18] sm:$0xff] %vm34, 0.0
      %39 = vst.msk [vmem:[#allocation2 + $0x20] sm:$0xff] %vm34, 0.0
      %40 = vst.msk [vmem:[#allocation2 + $0x28] sm:$0xff] %vm34, 0.0
      %41 = vst.msk [vmem:[#allocation2 + $0x30] sm:$0xff] %vm34, 0.0
      %42 = vst.msk [vmem:[#allocation2 + $0x38] sm:$0xff] %vm34, 0.0
      %43 = vst.msk [vmem:[#allocation2 + $0x40] sm:$0xff] %vm34, 0.0
      %44 = vst.msk [vmem:[#allocation2 + $0x48] sm:$0xff] %vm34, 0.0
      %45 = vst.msk [vmem:[#allocation2 + $0x50] sm:$0xff] %vm34, 0.0
      %46 = vst.msk [vmem:[#allocation2 + $0x58] sm:$0xff] %vm34, 0.0
    $region21: #{tpu_custom_call.1} parent=1 // pred_fallthru
      _
    %v47 = vld [vmem:[%s1] sm:$0xf]
    %v48 = vld [vmem:[%s1 + $0x4] sm:$0xf]
    %v49 = vld [vmem:[%s1 + $0x8] sm:$0xf]
    %v50 = vld [vmem:[%s1 + $0xc] sm:$0xf]
    %v51 = vld [vmem:[#allocation3] sm:$0xff]
    %v52 = vld [vmem:[#allocation3 + $0x8] sm:$0xff]
    %v53 = vld [vmem:[#allocation3 + $0x10] sm:$0xff]
    %v54 = vld [vmem:[#allocation3 + $0x18] sm:$0xff]
    %v55 = vld [vmem:[#allocation3 + $0x20] sm:$0xff]
    %v56 = vld [vmem:[#allocation3 + $0x28] sm:$0xff]
    %v57 = vpack.c.bf16 %v52, %v51
    %v58 = vpack.c.bf16 %v54, %v53
    %v59 = vpack.c.bf16 %v56, %v55
    %v60 = vld [vmem:[#allocation2] sm:$0xff]
    %v61 = vld [vmem:[#allocation2 + $0x8] sm:$0xff]
    %v62 = vld [vmem:[#allocation2 + $0x10] sm:$0xff]
    %v63 = vld [vmem:[#allocation2 + $0x18] sm:$0xff]
    %v68 = vunpack.c.l.b16 %v47
    %v69 = vunpack.c.l.b16 %v48
    %v70 = vunpack.c.l.b16 %v49
    %v71 = vunpack.c.l.b16 %v50
    %v72 = vpack.c.b16 %v69, %v68
    %v73 = vpack.c.b16 %v71, %v70
    %vm74 = vcmask 130048
    %v76 = vsel %vm74, %v72, 0
    %v79 = vsel %vm74, %v73, 0
    %81 = vmatprep.subr.bf16.mxu0 0
    %82 = vmatpush1.bf16.msra.mxu0 0
    %83 = vmatprep.subr.bf16.mxu0 0
    %84 = vmatpush1.bf16.msra.mxu0 0
    %85 = vmatprep.subr.bf16.mxu0 0
    %86 = vmatpush1.bf16.msra.mxu0 0
    %87 = vmatprep.subr.bf16.mxu0 0
    %88 = vmatpush1.bf16.msra.mxu0 0
    %89 = vmatprep.subr.bf16.mxu0 0
    %90 = vmatpush1.bf16.msra.mxu0 0
    %91 = vmatprep.subr.bf16.mxu0 0
    %92 = vmatpush1.bf16.msra.mxu0 0
    %93 = vmatprep.subr.bf16.mxu0 0
    %94 = vmatpush1.bf16.msra.mxu0 0
    %95 = vmatprep.subr.bf16.mxu0 0
    %96 = vmatpush1.bf16.msra.mxu0 %v57
    %97 = vmatprep.subr.bf16.mxu0 0
    %98 = vmatpush2.bf16.msra.mxu0 0
    %99 = vmatprep.subr.bf16.mxu0 0
    %100 = vmatpush2.bf16.msra.mxu0 0
    %101 = vmatprep.subr.bf16.mxu0 0
    %102 = vmatpush2.bf16.msra.mxu0 0
    %103 = vmatprep.subr.bf16.mxu0 0
    %104 = vmatpush2.bf16.msra.mxu0 0
    %105 = vmatprep.subr.bf16.mxu0 0
    %106 = vmatpush2.bf16.msra.mxu0 0
    %107 = vmatprep.subr.bf16.mxu0 0
    %108 = vmatpush2.bf16.msra.mxu0 0
    %109 = vmatprep.subr.bf16.mxu0 0
    %110 = vmatpush2.bf16.msra.mxu0 0
    %111 = vmatprep.subr.bf16.mxu0 0
    %112 = vmatpush2.bf16.msra.mxu0 0
    %113 = vmatprep.mubr.bf16.mxu0 0
    %114 = vmatmul.mubr.bf16.gmra.mxu0 %v76
    %v115 = vpop.f32.mrf.mxu0
    %v116 = vadd.f32 0.0, %v115
    %v117 = vpop.f32.mrf.mxu0
    %v118 = vpop.f32.mrf.mxu0
    %v119 = vadd.f32 0.0, %v118
    %v120 = vpop.f32.mrf.mxu0
    %121 = vmatprep.mubr.bf16.mxu0 0
    %122 = vmatmul.mubr.bf16.gmra.mxu0 %v79
    %v123 = vpop.f32.mrf.mxu0
    %v124 = vadd.f32 0.0, %v123
    %v125 = vpop.f32.mrf.mxu0
    %v126 = vpop.f32.mrf.mxu0
    %v127 = vadd.f32 0.0, %v126
    %v128 = vpop.f32.mrf.mxu0
    %129 = vdwg.mxu0
    %v130 = vadd.f32 %v60, %v116
    %v131 = vadd.f32 %v61, %v119
    %v132 = vadd.f32 %v62, %v124
    %v133 = vadd.f32 %v63, %v127
    %134 = vst.msk [vmem:[#allocation2] sm:$0xff] %vm74, %v130
    %135 = vst.msk [vmem:[#allocation2 + $0x8] sm:$0xff] %vm74, %v131
    %136 = vst.msk [vmem:[#allocation2 + $0x10] sm:$0xff] %vm74, %v132
    %137 = vst.msk [vmem:[#allocation2 + $0x18] sm:$0xff] %vm74, %v133
    %s138 = scalar_lea.vmem [#allocation2], 32
    %v139 = vld [vmem:[%s138] sm:$0xff]
    %v140 = vld [vmem:[%s138 + $0x8] sm:$0xff]
    %v141 = vld [vmem:[%s138 + $0x10] sm:$0xff]
    %v142 = vld [vmem:[%s138 + $0x18] sm:$0xff]
    %143 = vmatprep.subr.bf16.mxu0 0
    %144 = vmatpush1.bf16.msra.mxu0 0
    %145 = vmatprep.subr.bf16.mxu0 0
    %146 = vmatpush1.bf16.msra.mxu0 0
    %147 = vmatprep.subr.bf16.mxu0 0
    %148 = vmatpush1.bf16.msra.mxu0 0
    %149 = vmatprep.subr.bf16.mxu0 0
    %150 = vmatpush1.bf16.msra.mxu0 0
    %151 = vmatprep.subr.bf16.mxu0 0
    %152 = vmatpush1.bf16.msra.mxu0 0
    %153 = vmatprep.subr.bf16.mxu0 0
    %154 = vmatpush1.bf16.msra.mxu0 0
    %155 = vmatprep.subr.bf16.mxu0 0
    %156 = vmatpush1.bf16.msra.mxu0 0
    %157 = vmatprep.subr.bf16.mxu0 0
    %158 = vmatpush1.bf16.msra.mxu0 %v58
    %159 = vmatprep.subr.bf16.mxu0 0
    %160 = vmatpush2.bf16.msra.mxu0 0
    %161 = vmatprep.subr.bf16.mxu0 0
    %162 = vmatpush2.bf16.msra.mxu0 0
    %163 = vmatprep.subr.bf16.mxu0 0
    %164 = vmatpush2.bf16.msra.mxu0 0
    %165 = vmatprep.subr.bf16.mxu0 0
    %166 = vmatpush2.bf16.msra.mxu0 0
    %167 = vmatprep.subr.bf16.mxu0 0
    %168 = vmatpush2.bf16.msra.mxu0 0
    %169 = vmatprep.subr.bf16.mxu0 0
    %170 = vmatpush2.bf16.msra.mxu0 0
    %171 = vmatprep.subr.bf16.mxu0 0
    %172 = vmatpush2.bf16.msra.mxu0 0
    %173 = vmatprep.subr.bf16.mxu0 0
    %174 = vmatpush2.bf16.msra.mxu0 0
    %175 = vmatprep.mubr.bf16.mxu0 0
    %176 = vmatmul.mubr.bf16.gmra.mxu0 %v76
    %v177 = vpop.f32.mrf.mxu0
    %v178 = vadd.f32 0.0, %v177
    %v179 = vpop.f32.mrf.mxu0
    %v180 = vpop.f32.mrf.mxu0
    %v181 = vadd.f32 0.0, %v180
    %v182 = vpop.f32.mrf.mxu0
    %183 = vmatprep.mubr.bf16.mxu0 0
    %184 = vmatmul.mubr.bf16.gmra.mxu0 %v79
    %v185 = vpop.f32.mrf.mxu0
    %v186 = vadd.f32 0.0, %v185
    %v187 = vpop.f32.mrf.mxu0
    %v188 = vpop.f32.mrf.mxu0
    %v189 = vadd.f32 0.0, %v188
    %v190 = vpop.f32.mrf.mxu0
    %191 = vdwg.mxu0
    %v192 = vadd.f32 %v139, %v178
    %v193 = vadd.f32 %v140, %v181
    %v194 = vadd.f32 %v141, %v186
    %v195 = vadd.f32 %v142, %v189
    %196 = vst.msk [vmem:[%s138] sm:$0xff] %vm74, %v192
    %197 = vst.msk [vmem:[%s138 + $0x8] sm:$0xff] %vm74, %v193
    %198 = vst.msk [vmem:[%s138 + $0x10] sm:$0xff] %vm74, %v194
    %199 = vst.msk [vmem:[%s138 + $0x18] sm:$0xff] %vm74, %v195
    %s200 = scalar_lea.vmem [#allocation2], 64
    %v201 = vld [vmem:[%s200] sm:$0xff]
    %v202 = vld [vmem:[%s200 + $0x8] sm:$0xff]
    %v203 = vld [vmem:[%s200 + $0x10] sm:$0xff]
    %v204 = vld [vmem:[%s200 + $0x18] sm:$0xff]
    %205 = vmatprep.subr.bf16.mxu0 0
    %206 = vmatpush1.bf16.msra.mxu0 0
    %207 = vmatprep.subr.bf16.mxu0 0
    %208 = vmatpush1.bf16.msra.mxu0 0
    %209 = vmatprep.subr.bf16.mxu0 0
    %210 = vmatpush1.bf16.msra.mxu0 0
    %211 = vmatprep.subr.bf16.mxu0 0
    %212 = vmatpush1.bf16.msra.mxu0 0
    %213 = vmatprep.subr.bf16.mxu0 0
    %214 = vmatpush1.bf16.msra.mxu0 0
    %215 = vmatprep.subr.bf16.mxu0 0
    %216 = vmatpush1.bf16.msra.mxu0 0
    %217 = vmatprep.subr.bf16.mxu0 0
    %218 = vmatpush1.bf16.msra.mxu0 0
    %219 = vmatprep.subr.bf16.mxu0 0
    %220 = vmatpush1.bf16.msra.mxu0 %v59
    %221 = vmatprep.subr.bf16.mxu0 0
    %222 = vmatpush2.bf16.msra.mxu0 0
    %223 = vmatprep.subr.bf16.mxu0 0
    %224 = vmatpush2.bf16.msra.mxu0 0
    %225 = vmatprep.subr.bf16.mxu0 0
    %226 = vmatpush2.bf16.msra.mxu0 0
    %227 = vmatprep.subr.bf16.mxu0 0
    %228 = vmatpush2.bf16.msra.mxu0 0
    %229 = vmatprep.subr.bf16.mxu0 0
    %230 = vmatpush2.bf16.msra.mxu0 0
    %231 = vmatprep.subr.bf16.mxu0 0
    %232 = vmatpush2.bf16.msra.mxu0 0
    %233 = vmatprep.subr.bf16.mxu0 0
    %234 = vmatpush2.bf16.msra.mxu0 0
    %235 = vmatprep.subr.bf16.mxu0 0
    %236 = vmatpush2.bf16.msra.mxu0 0
    %237 = vmatprep.mubr.bf16.mxu0 0
    %238 = vmatmul.mubr.bf16.gmra.mxu0 %v76
    %v239 = vpop.f32.mrf.mxu0
    %v240 = vadd.f32 0.0, %v239
    %v241 = vpop.f32.mrf.mxu0
    %v242 = vpop.f32.mrf.mxu0
    %v243 = vadd.f32 0.0, %v242
    %v244 = vpop.f32.mrf.mxu0
    %245 = vmatprep.mubr.bf16.mxu0 0
    %246 = vmatmul.mubr.bf16.gmra.mxu0 %v79
    %v247 = vpop.f32.mrf.mxu0
    %v248 = vadd.f32 0.0, %v247
    %v249 = vpop.f32.mrf.mxu0
    %v250 = vpop.f32.mrf.mxu0
    %v251 = vadd.f32 0.0, %v250
    %v252 = vpop.f32.mrf.mxu0
    %253 = vdwg.mxu0
    %v254 = vadd.f32 %v201, %v240
    %v255 = vadd.f32 %v202, %v243
    %v256 = vadd.f32 %v203, %v248
    %v257 = vadd.f32 %v204, %v251
    %258 = vst.msk [vmem:[%s200] sm:$0xff] %vm74, %v254
    %259 = vst.msk [vmem:[%s200 + $0x8] sm:$0xff] %vm74, %v255
    %260 = vst.msk [vmem:[%s200 + $0x10] sm:$0xff] %vm74, %v256
    %261 = vst.msk [vmem:[%s200 + $0x18] sm:$0xff] %vm74, %v257
    // Predicated region
    $region22: #{tpu_custom_call.1} parent=1 // pred_check
      %p262 = pneg %p30
    $region23: #{tpu_custom_call.1} parent=1 // pred_check_branch
      %264 = sbr.rel (%p262) target = $region25
    $region24: #{tpu_custom_call.1} parent=1 // pred_region
      %v265 = vld [vmem:[%s2] sm:$0xf]
      %v266 = vld [vmem:[%s2 + $0x4] sm:$0xf]
      %v267 = vld [vmem:[#allocation2] sm:$0xff]
      %v268 = vld [vmem:[#allocation2 + $0x8] sm:$0xff]
      %v269 = vld [vmem:[#allocation2 + $0x10] sm:$0xff]
      %v270 = vld [vmem:[#allocation2 + $0x18] sm:$0xff]
      %v271 = vpack.c.bf16 %v268, %v267
      %v272 = vpack.c.bf16 %v270, %v269
      %v275 = vunpack.c.l.b16 %v265
      %v276 = vunpack.c.l.b16 %v266
      %v277 = vpack.c.b16 %v276, %v275
      %v280 = vsel %vm74, %v271, 0
      %v283 = vsel %vm74, %v272, 0
      %285 = vmatprep.subr.bf16.mxu0 0
      %286 = vmatpush1.bf16.msra.mxu0 0
      %287 = vmatprep.subr.bf16.mxu0 0
      %288 = vmatpush1.bf16.msra.mxu0 0
      %289 = vmatprep.subr.bf16.mxu0 0
      %290 = vmatpush1.bf16.msra.mxu0 0
      %291 = vmatprep.subr.bf16.mxu0 0
      %292 = vmatpush1.bf16.msra.mxu0 0
      %293 = vmatprep.subr.bf16.mxu0 0
      %294 = vmatpush1.bf16.msra.mxu0 0
      %295 = vmatprep.subr.bf16.mxu0 0
      %296 = vmatpush1.bf16.msra.mxu0 0
      %297 = vmatprep.subr.bf16.mxu0 0
      %298 = vmatpush1.bf16.msra.mxu0 0
      %299 = vmatprep.subr.bf16.mxu0 0
      %300 = vmatpush1.bf16.msra.mxu0 %v277
      %301 = vmatprep.subr.bf16.mxu0 0
      %302 = vmatpush2.bf16.msra.mxu0 0
      %303 = vmatprep.subr.bf16.mxu0 0
      %304 = vmatpush2.bf16.msra.mxu0 0
      %305 = vmatprep.subr.bf16.mxu0 0
      %306 = vmatpush2.bf16.msra.mxu0 0
      %307 = vmatprep.subr.bf16.mxu0 0
      %308 = vmatpush2.bf16.msra.mxu0 0
      %309 = vmatprep.subr.bf16.mxu0 0
      %310 = vmatpush2.bf16.msra.mxu0 0
      %311 = vmatprep.subr.bf16.mxu0 0
      %312 = vmatpush2.bf16.msra.mxu0 0
      %313 = vmatprep.subr.bf16.mxu0 0
      %314 = vmatpush2.bf16.msra.mxu0 0
      %315 = vmatprep.subr.bf16.mxu0 0
      %316 = vmatpush2.bf16.msra.mxu0 0
      %317 = vmatprep.mubr.bf16.mxu0 0
      %318 = vmatmul.mubr.bf16.gmra.mxu0 %v280
      %v319 = vpop.f32.mrf.mxu0
      %v320 = vadd.f32 0.0, %v319
      %v321 = vpop.f32.mrf.mxu0
      %v322 = vpop.f32.mrf.mxu0
      %v323 = vadd.f32 0.0, %v322
      %v324 = vpop.f32.mrf.mxu0
      %325 = vmatprep.mubr.bf16.mxu0 0
      %326 = vmatmul.mubr.bf16.gmra.mxu0 %v283
      %v327 = vpop.f32.mrf.mxu0
      %v328 = vadd.f32 0.0, %v327
      %v329 = vpop.f32.mrf.mxu0
      %v330 = vpop.f32.mrf.mxu0
      %v331 = vadd.f32 0.0, %v330
      %v332 = vpop.f32.mrf.mxu0
      %333 = vdwg.mxu0
      %vm334 = vcmask 261120
      %335 = vst.msk [vmem:[#allocation6] sm:$0xff] %vm334, %v320
      %336 = vst.msk [vmem:[#allocation6 + $0x8] sm:$0xff] %vm334, %v323
      %337 = vst.msk [vmem:[#allocation6 + $0x10] sm:$0xff] %vm334, %v328
      %338 = vst.msk [vmem:[#allocation6 + $0x18] sm:$0xff] %vm334, %v331
      %v339 = vld [vmem:[%s138] sm:$0xff]
      %v340 = vld [vmem:[%s138 + $0x8] sm:$0xff]
      %v341 = vld [vmem:[%s138 + $0x10] sm:$0xff]
      %v342 = vld [vmem:[%s138 + $0x18] sm:$0xff]
      %v343 = vpack.c.bf16 %v340, %v339
      %v344 = vpack.c.bf16 %v342, %v341
      %v346 = vsel %vm74, %v343, 0
      %v349 = vsel %vm74, %v344, 0
      %351 = vmatprep.subr.bf16.mxu0 0
      %352 = vmatpush1.bf16.msra.mxu0 0
      %353 = vmatprep.subr.bf16.mxu0 0
      %354 = vmatpush1.bf16.msra.mxu0 0
      %355 = vmatprep.subr.bf16.mxu0 0
      %356 = vmatpush1.bf16.msra.mxu0 0
      %357 = vmatprep.subr.bf16.mxu0 0
      %358 = vmatpush1.bf16.msra.mxu0 0
      %359 = vmatprep.subr.bf16.mxu0 0
      %360 = vmatpush1.bf16.msra.mxu0 0
      %361 = vmatprep.subr.bf16.mxu0 0
      %362 = vmatpush1.bf16.msra.mxu0 0
      %363 = vmatprep.subr.bf16.mxu0 0
      %364 = vmatpush1.bf16.msra.mxu0 0
      %365 = vmatprep.subr.bf16.mxu0 0
      %366 = vmatpush1.bf16.msra.mxu0 %v277
      %367 = vmatprep.subr.bf16.mxu0 0
      %368 = vmatpush2.bf16.msra.mxu0 0
      %369 = vmatprep.subr.bf16.mxu0 0
      %370 = vmatpush2.bf16.msra.mxu0 0
      %371 = vmatprep.subr.bf16.mxu0 0
      %372 = vmatpush2.bf16.msra.mxu0 0
      %373 = vmatprep.subr.bf16.mxu0 0
      %374 = vmatpush2.bf16.msra.mxu0 0
      %375 = vmatprep.subr.bf16.mxu0 0
      %376 = vmatpush2.bf16.msra.mxu0 0
      %377 = vmatprep.subr.bf16.mxu0 0
      %378 = vmatpush2.bf16.msra.mxu0 0
      %379 = vmatprep.subr.bf16.mxu0 0
      %380 = vmatpush2.bf16.msra.mxu0 0
      %381 = vmatprep.subr.bf16.mxu0 0
      %382 = vmatpush2.bf16.msra.mxu0 0
      %383 = vmatprep.mubr.bf16.mxu0 0
      %384 = vmatmul.mubr.bf16.gmra.mxu0 %v346
      %v385 = vpop.f32.mrf.mxu0
      %v386 = vadd.f32 0.0, %v385
      %v387 = vpop.f32.mrf.mxu0
      %v388 = vpop.f32.mrf.mxu0
      %v389 = vadd.f32 0.0, %v388
      %v390 = vpop.f32.mrf.mxu0
      %391 = vmatprep.mubr.bf16.mxu0 0
      %392 = vmatmul.mubr.bf16.gmra.mxu0 %v349
      %v393 = vpop.f32.mrf.mxu0
      %v394 = vadd.f32 0.0, %v393
      %v395 = vpop.f32.mrf.mxu0
      %v396 = vpop.f32.mrf.mxu0
      %v397 = vadd.f32 0.0, %v396
      %v398 = vpop.f32.mrf.mxu0
      %399 = vdwg.mxu0
      %s400 = scalar_lea.vmem [#allocation6], 32
      %401 = vst.msk [vmem:[%s400] sm:$0xff] %vm334, %v386
      %402 = vst.msk [vmem:[%s400 + $0x8] sm:$0xff] %vm334, %v389
      %403 = vst.msk [vmem:[%s400 + $0x10] sm:$0xff] %vm334, %v394
      %404 = vst.msk [vmem:[%s400 + $0x18] sm:$0xff] %vm334, %v397
      %v405 = vld [vmem:[%s200] sm:$0xff]
      %v406 = vld [vmem:[%s200 + $0x8] sm:$0xff]
      %v407 = vld [vmem:[%s200 + $0x10] sm:$0xff]
      %v408 = vld [vmem:[%s200 + $0x18] sm:$0xff]
      %v409 = vpack.c.bf16 %v406, %v405
      %v410 = vpack.c.bf16 %v408, %v407
      %v412 = vsel %vm74, %v409, 0
      %v415 = vsel %vm74, %v410, 0
      %417 = vmatprep.subr.bf16.mxu0 0
      %418 = vmatpush1.bf16.msra.mxu0 0
      %419 = vmatprep.subr.bf16.mxu0 0
      %420 = vmatpush1.bf16.msra.mxu0 0
      %421 = vmatprep.subr.bf16.mxu0 0
      %422 = vmatpush1.bf16.msra.mxu0 0
      %423 = vmatprep.subr.bf16.mxu0 0
      %424 = vmatpush1.bf16.msra.mxu0 0
      %425 = vmatprep.subr.bf16.mxu0 0
      %426 = vmatpush1.bf16.msra.mxu0 0
      %427 = vmatprep.subr.bf16.mxu0 0
      %428 = vmatpush1.bf16.msra.mxu0 0
      %429 = vmatprep.subr.bf16.mxu0 0
      %430 = vmatpush1.bf16.msra.mxu0 0
      %431 = vmatprep.subr.bf16.mxu0 0
      %432 = vmatpush1.bf16.msra.mxu0 %v277
      %433 = vmatprep.subr.bf16.mxu0 0
      %434 = vmatpush2.bf16.msra.mxu0 0
      %435 = vmatprep.subr.bf16.mxu0 0
      %436 = vmatpush2.bf16.msra.mxu0 0
      %437 = vmatprep.subr.bf16.mxu0 0
      %438 = vmatpush2.bf16.msra.mxu0 0
      %439 = vmatprep.subr.bf16.mxu0 0
      %440 = vmatpush2.bf16.msra.mxu0 0
      %441 = vmatprep.subr.bf16.mxu0 0
      %442 = vmatpush2.bf16.msra.mxu0 0
      %443 = vmatprep.subr.bf16.mxu0 0
      %444 = vmatpush2.bf16.msra.mxu0 0
      %445 = vmatprep.subr.bf16.mxu0 0
      %446 = vmatpush2.bf16.msra.mxu0 0
      %447 = vmatprep.subr.bf16.mxu0 0
      %448 = vmatpush2.bf16.msra.mxu0 0
      %449 = vmatprep.mubr.bf16.mxu0 0
      %450 = vmatmul.mubr.bf16.gmra.mxu0 %v412
      %v451 = vpop.f32.mrf.mxu0
      %v452 = vadd.f32 0.0, %v451
      %v453 = vpop.f32.mrf.mxu0
      %v454 = vpop.f32.mrf.mxu0
      %v455 = vadd.f32 0.0, %v454
      %v456 = vpop.f32.mrf.mxu0
      %457 = vmatprep.mubr.bf16.mxu0 0
      %458 = vmatmul.mubr.bf16.gmra.mxu0 %v415
      %v459 = vpop.f32.mrf.mxu0
      %v460 = vadd.f32 0.0, %v459
      %v461 = vpop.f32.mrf.mxu0
      %v462 = vpop.f32.mrf.mxu0
      %v463 = vadd.f32 0.0, %v462
      %v464 = vpop.f32.mrf.mxu0
      %465 = vdwg.mxu0
      %s466 = scalar_lea.vmem [#allocation6], 64
      %467 = vst.msk [vmem:[%s466] sm:$0xff] %vm334, %v452
      %468 = vst.msk [vmem:[%s466 + $0x8] sm:$0xff] %vm334, %v455
      %469 = vst.msk [vmem:[%s466 + $0x10] sm:$0xff] %vm334, %v460
      %470 = vst.msk [vmem:[%s466 + $0x18] sm:$0xff] %vm334, %v463
    $region25: #{tpu_custom_call.1} parent=1 // pred_fallthru
      _
    // Predicated region
    $region26: #{tpu_custom_call.1} parent=1 // pred_check
      _
    $region27: #{tpu_custom_call.1} parent=1 // pred_check_branch
      %472 = sbr.rel (0) target = $region29
    $region28: #{tpu_custom_call.1} parent=1 // pred_region
      %s474 = ssub.s32 1536, 1536
      %475 = vsyncadd [#allocation5], %s474
      %s476 = sshll.u32 [#allocation6], 4
      %s477 = int_to_ptr.vmem [resolvable:$true] %s476
      %482 = dma.vmem_to_hbm [thread:$0]  %s477, 1536, %s3, [#allocation5], 128, 128, 8
    $region29: #{tpu_custom_call.1} parent=1 // pred_fallthru
      _
    // Predicated region
    $region30: #{tpu_custom_call.1} parent=1 // pred_check
      _
    $region31: #{tpu_custom_call.1} parent=1 // pred_check_branch
      %484 = sbr.rel (0) target = $region33
    $region32: #{tpu_custom_call.1} parent=1 // pred_region
      %485 = dma.done [#allocation5], 1536
    $region33: #{tpu_custom_call.1} parent=1 // pred_fallthru
      _
    %486 = vsyncpa [#allocation4], 1
    %487 = vsyncpa [#allocation5], 1

</llo_original>
